<compile_context>
chip_gen: v6e
topology: v6e:2x2x1
jax: 0.10.0
libtpu: 0.0.40
codegen_flags: <defaults>
</compile_context>

<pallas_src>
import functools

import jax
import jax.numpy as jnp
from jax.experimental import pallas as pl
from jax.experimental.pallas import tpu as pltpu


# ----------------------------------------------------------------------------
# Fused kernel: batched PointNet core + folded head + visibility masking
#
# Operands (consolidated):
#   pts_ref : (M*P, C_in)        f32  raw points (cast to bf16 in-kernel, no host pad)
#   aux_ref : (M, center_dim+1)  f32  [obj_center | vis_mask]
#   w_ref   : (C_pad+2*H, H)     bf16 [w1(pad) ; w2(pad) ; w3]   shared-MLP slab
#   f_ref   : (H+cd+5, CLS)      f32  [wa ; wb ; b1 ; b2 ; b3 ; b_fold ; w_c2^T]
#   bc2_ref : (1, 1)             f32  final classifier bias (SMEM scalar)
# ----------------------------------------------------------------------------
def _fused_kernel(pts_ref, aux_ref, w_ref, f_ref, bc2_ref, out_ref, *,
                  n_obj, n_pts, c_in, c_pad, hdim, center_dim):
    # static row offsets inside the f32 slab
    r_wa, r_wb = 0, hdim
    r_b1 = hdim + center_dim
    r_b2, r_b3, r_bf, r_wc2 = r_b1 + 1, r_b1 + 2, r_b1 + 3, r_b1 + 4

    # ---- shared MLP over ALL objects*points at once (MXU bf16 in / f32 accumulate) ----
    x = pts_ref[...].astype(jnp.bfloat16)                                # cast in-kernel
    h = jnp.dot(x, w_ref[0:c_in, :], preferred_element_type=jnp.float32)
    h = jnp.maximum(h + f_ref[r_b1:r_b1 + 1, 0:hdim], 0.0)
    h = jnp.dot(h.astype(jnp.bfloat16), w_ref[c_pad:c_pad + hdim, :],
                preferred_element_type=jnp.float32)
    h = jnp.maximum(h + f_ref[r_b2:r_b2 + 1, 0:hdim], 0.0)
    h = jnp.dot(h.astype(jnp.bfloat16), w_ref[c_pad + hdim:c_pad + 2 * hdim, :],
                preferred_element_type=jnp.float32)
    h = jnp.maximum(h + f_ref[r_b3:r_b3 + 1, 0:hdim], 0.0)               # (M*P, H) f32

    # ---- symmetric aggregation: per-object max over points (P multiple of 8) ----
    pc = jnp.max(h.reshape(n_obj, n_pts, hdim), axis=1)                  # (M, H) f32

    # ---- folded head: relu(pc @ (Wproj@Wc1) + ctr @ (Wpos@Wc1) + b_fold) ----
    z = jnp.dot(pc, f_ref[r_wa:r_wa + hdim, :],
                preferred_element_type=jnp.float32)                      # wa kept f32
    ctr = aux_ref[:, 0:center_dim]                                       # (M, cd) f32
    msk = aux_ref[:, center_dim:center_dim + 1]                          # (M, 1) f32
    for k in range(center_dim):                                          # tiny K -> VPU MACs
        z = z + ctr[:, k:k + 1] * f_ref[r_wb + k:r_wb + k + 1, :]
    hcls = jnp.maximum(z + f_ref[r_bf:r_bf + 1, :], 0.0)                 # (M, CLS) f32

    # ---- final CLS -> 1 as VPU multiply + lane reduce (no N=1 MXU matmul) ----
    s = jnp.sum(hcls * f_ref[r_wc2:r_wc2 + 1, :], axis=-1, keepdims=True)
    s = s + bc2_ref[0, 0]                                                # + classifier bias
    s = s + (1.0 - msk) * (-9999.0)                                      # visibility masking
    out_ref[...] = s                                                     # compact (M, 1) store


# ----------------------------------------------------------------------------
# Parameter init (deterministic, torch.nn.Linear-style uniform) -- module-shaped
# ----------------------------------------------------------------------------
def _linear_init(key, fan_in, fan_out):
    kw, kb = jax.random.split(key)
    bound = 1.0 / jnp.sqrt(float(fan_in))
    w = jax.random.uniform(kw, (fan_in, fan_out), jnp.float32, -bound, bound)
    b = jax.random.uniform(kb, (1, fan_out), jnp.float32, -bound, bound)
    return w, b


def init_params(key, c_in, h1, h2, pc_out_dim, vis_out_dim, center_dim, cls_hidden=256):
    keys = jax.random.split(key, 7)
    p = {}
    p["w1"], p["b1"] = _linear_init(keys[0], c_in, h1)
    p["w2"], p["b2"] = _linear_init(keys[1], h1, h2)
    p["w3"], p["b3"] = _linear_init(keys[2], h2, pc_out_dim)
    p["w_proj"], p["b_proj"] = _linear_init(keys[3], pc_out_dim, vis_out_dim)
    p["w_pos"], p["b_pos"] = _linear_init(keys[4], center_dim, vis_out_dim)
    p["w_c1"], p["b_c1"] = _linear_init(keys[5], vis_out_dim, cls_hidden)
    p["w_c2"], p["b_c2"] = _linear_init(keys[6], cls_hidden, 1)
    return p


# ----------------------------------------------------------------------------
# One-time host-side fold / pad / pack (outside the hot path)
# ----------------------------------------------------------------------------
def fold_params(p, c_pad=32, hdim=128):
    """classifier_l1(proj(pc) + pos_emb(ctr)) is linear in pc and ctr (no nonlinearity /
    LayerNorm in between in the 'no_lang' config), so
        wa = W_proj @ W_c1,  wb = W_pos @ W_c1,  b_fold = (b_proj+b_pos) @ W_c1 + b_c1.
    Hidden widths are zero-padded to `hdim` for lane-dense activations; all weights are
    packed into one bf16 slab + one f32 slab + one SMEM scalar (5 kernel operands)."""
    c_in, h1 = p["w1"].shape
    h2 = p["w2"].shape[1]
    pc_out = p["w3"].shape[1]
    cls_hidden = p["w_c1"].shape[1]
    center_dim = p["w_pos"].shape[0]
    assert c_in <= c_pad and max(h1, h2, pc_out) <= hdim

    def pad2(x, rows, cols):
        return jnp.zeros((rows, cols), jnp.float32).at[:x.shape[0], :x.shape[1]].set(x)

    # bf16 weight slab: rows [0:c_pad)=w1, [c_pad:c_pad+hdim)=w2, [..:..+hdim)=w3
    w_slab = jnp.concatenate([pad2(p["w1"], c_pad, hdim),
                              pad2(p["w2"], hdim, hdim),
                              pad2(p["w3"], hdim, hdim)], axis=0).astype(jnp.bfloat16)

    wa = pad2(p["w_proj"] @ p["w_c1"], hdim, cls_hidden)            # f32 (parity)
    wb = p["w_pos"] @ p["w_c1"]                                     # (center_dim, cls)
    b_fold = (p["b_proj"] + p["b_pos"]) @ p["w_c1"] + p["b_c1"]     # (1, cls)
    f_slab = jnp.concatenate([wa, wb,
                              pad2(p["b1"], 1, cls_hidden),
                              pad2(p["b2"], 1, cls_hidden),
                              pad2(p["b3"], 1, cls_hidden),
                              b_fold,
                              p["w_c2"].T], axis=0)
    pad_rows = (-f_slab.shape[0]) % 8                               # keep sublane-aligned
    if pad_rows:
        f_slab = jnp.pad(f_slab, ((0, pad_rows), (0, 0)))

    return {"w_slab": w_slab,                      # (c_pad + 2*hdim, hdim) bf16
            "f_slab": f_slab,                      # (hdim + cd + 5 [+pad], cls) f32
            "b_c2": p["b_c2"].reshape(1, 1)}       # (1, 1) f32 -> SMEM


# ----------------------------------------------------------------------------
# Full forward (mirrors ViLBert3D.forward signature; unused args kept for parity)
# ----------------------------------------------------------------------------
@jax.jit
def vilbert3d_forward(fparams, image, boxes2d, points, spatial, vis_mask,
                      token, mask, segment_ids, obj_center):
    # image / boxes2d unused (no_img=True); token/mask/segment_ids/spatial unused (no_lang).
    del image, boxes2d, spatial, token, mask, segment_ids
    B, N, P, C = points.shape
    M = B * N
    w_slab, f_slab, b_c2 = fparams["w_slab"], fparams["f_slab"], fparams["b_c2"]
    hdim = w_slab.shape[1]
    c_pad = w_slab.shape[0] - 2 * hdim
    cls_hidden = f_slab.shape[1]
    center_dim = obj_center.shape[-1]

    pts = points.reshape(M * P, C).astype(jnp.float32)               # metadata-only reshape
    aux = jnp.concatenate([obj_center.reshape(M, center_dim),
                           vis_mask.reshape(M, 1)], axis=1).astype(jnp.float32)

    kernel = functools.partial(_fused_kernel, n_obj=M, n_pts=P, c_in=C,
                               c_pad=c_pad, hdim=hdim, center_dim=center_dim)

    flops = (2 * M * P * (C * hdim + 2 * hdim * hdim)
             + 2 * M * hdim * cls_hidden + 4 * M * cls_hidden)
    bytes_accessed = (pts.size * 4 + aux.size * 4 + w_slab.size * 2
                      + f_slab.size * 4 + 4 + M * 4)

    out = pl.pallas_call(
        kernel,
        out_shape=jax.ShapeDtypeStruct((M, 1), jnp.float32),         # compact score column
        in_specs=[
            pl.BlockSpec(memory_space=pltpu.MemorySpace.VMEM),       # points (f32, cast in-kernel)
            pl.BlockSpec(memory_space=pltpu.MemorySpace.VMEM),       # [obj_center | vis_mask]
            pl.BlockSpec(memory_space=pltpu.MemorySpace.VMEM),       # bf16 weight slab
            pl.BlockSpec(memory_space=pltpu.MemorySpace.VMEM),       # f32 head/bias slab
            pl.BlockSpec(memory_space=pltpu.MemorySpace.SMEM),       # scalar classifier bias
        ],
        out_specs=pl.BlockSpec(memory_space=pltpu.MemorySpace.VMEM),
        cost_estimate=pl.CostEstimate(flops=flops, transcendentals=0,
                                      bytes_accessed=bytes_accessed),
    )(pts, aux, w_slab, f_slab, b_c2)

    return out.reshape(B, N)                                          # matches .squeeze(-1)


# ----------------------------------------------------------------------------
# Pure-JAX f32 reference of the implemented configuration (for a sanity check)
# ----------------------------------------------------------------------------
def reference_forward(p, points, vis_mask, obj_center):
    B, N, P, C = points.shape
    x = points.reshape(B * N, P, C)
    h = jax.nn.relu(x @ p["w1"] + p["b1"])
    h = jax.nn.relu(h @ p["w2"] + p["b2"])
    h = jax.nn.relu(h @ p["w3"] + p["b3"])
    pc = jnp.max(h, axis=1)
    feat = (pc @ p["w_proj"] + p["b_proj"]
            + obj_center.reshape(B * N, -1) @ p["w_pos"] + p["b_pos"])
    hcls = jax.nn.relu(feat @ p["w_c1"] + p["b_c1"])
    score = (hcls @ p["w_c2"] + p["b_c2"]).reshape(B, N)
    return score + (1.0 - vis_mask) * (-9999.0)


if __name__ == "__main__":
    key = jax.random.PRNGKey(0)

    # Small shapes consistent with the module
    B, N_OBJ, P, C_IN = 2, 8, 32, 20        # C_IN = 20 (args.no_rgb = False)
    H1, H2 = 64, 128                        # simplified shared-MLP widths (H1 padded to 128)
    PC_OUT_DIM = 128                        # args.pc_out_dim
    VIS_OUT_DIM = 32                        # args.vis_out_dim
    FRAME_NUM = 1                           # args.frame_num -> center dim = 3
    CENTER_DIM = 3 * FRAME_NUM

    k_par, k_pts, k_ctr, k_msk, k_img, k_box = jax.random.split(key, 6)
    params = init_params(k_par, C_IN, H1, H2, PC_OUT_DIM, VIS_OUT_DIM, CENTER_DIM)
    fparams = fold_params(params)           # one-time host-side fold / pad / pack

    points = jax.random.normal(k_pts, (B, N_OBJ, P, C_IN), jnp.float32)
    obj_center = jax.random.normal(k_ctr, (B, N_OBJ, CENTER_DIM), jnp.float32)
    vis_mask = (jax.random.uniform(k_msk, (B, N_OBJ)) > 0.25).astype(jnp.float32)

    # Unused under (no_img=True, no_lang) but kept to mirror the torch forward signature.
    image = jax.random.normal(k_img, (B, 3, 32, 32), jnp.float32)     # NCHW (unused)
    boxes2d = jax.random.uniform(k_box, (B, N_OBJ, 4), jnp.float32)   # (unused)
    spatial = jnp.zeros((B, N_OBJ, 8), jnp.float32)                   # (unused)
    token = jnp.zeros((B, 16), jnp.int32)                             # (unused)
    mask = jnp.ones((B, 16), jnp.int32)                               # (unused)
    segment_ids = jnp.zeros((B, 16), jnp.int32)                       # (unused)

    score = vilbert3d_forward(fparams, image, boxes2d, points, spatial, vis_mask,
                              token, mask, segment_ids, obj_center)
    score = jax.block_until_ready(score)
    assert score.shape == (B, N_OBJ), score.shape
    assert bool(jnp.all(jnp.isfinite(score)))

    # Loose numerics check vs. pure-JAX f32 reference (bf16 MXU inputs -> small drift)
    ref = reference_forward(params, points, vis_mask, obj_center)
    assert bool(jnp.allclose(score, ref, rtol=1e-2, atol=0.5)), float(jnp.max(jnp.abs(score - ref)))

    print("KERNEL_OK")
</pallas_src>

<mosaic_0001>
module attributes {stable_mosaic.version = 11 : i64} {
  func.func @_fused_kernel(%arg0: memref<512x20xf32, #tpu.memory_space<vmem>>, %arg1: memref<16x4xf32, #tpu.memory_space<vmem>>, %arg2: memref<288x128xbf16, #tpu.memory_space<vmem>>, %arg3: memref<136x256xf32, #tpu.memory_space<vmem>>, %arg4: memref<1x1xf32, #tpu.memory_space<smem>>, %arg5: memref<16x1xf32, #tpu.memory_space<vmem>>) attributes {dimension_semantics = [], scalar_prefetch = 0 : i64, scratch_operands = 0 : i64, tpu.core_type = #tpu.core_type<tc>} {
    %c0 = arith.constant 0 : index
    %c0_0 = arith.constant 0 : index
    %0 = vector.load %arg0[%c0, %c0_0] : memref<512x20xf32, #tpu.memory_space<vmem>>, vector<512x20xf32>
    %1 = arith.truncf %0 : vector<512x20xf32> to vector<512x20xbf16>
    %c0_1 = arith.constant 0 : index
    %c0_2 = arith.constant 0 : index
    %2 = vector.load %arg2[%c0_1, %c0_2] : memref<288x128xbf16, #tpu.memory_space<vmem>>, vector<20x128xbf16>
    %cst = arith.constant dense<0.000000e+00> : vector<512x128xf32>
    %3 = tpu.matmul %1, %2, %cst {dimension_numbers = #tpu.dot_dimension_numbers<[1], [0], [0], [1], [0, 0, 1, 1], [], []>} : vector<512x20xbf16>, vector<20x128xbf16>, vector<512x128xf32> -> vector<512x128xf32>
    %c131 = arith.constant 131 : index
    %c0_3 = arith.constant 0 : index
    %4 = vector.load %arg3[%c131, %c0_3] : memref<136x256xf32, #tpu.memory_space<vmem>>, vector<1x128xf32>
    %5 = vector.broadcast %4 : vector<1x128xf32> to vector<512x128xf32>
    %6 = arith.addf %3, %5 : vector<512x128xf32>
    %cst_4 = arith.constant 0.000000e+00 : f32
    %7 = vector.broadcast %cst_4 : f32 to vector<512x128xf32>
    %8 = arith.maximumf %6, %7 : vector<512x128xf32>
    %9 = arith.truncf %8 : vector<512x128xf32> to vector<512x128xbf16>
    %c32 = arith.constant 32 : index
    %c0_5 = arith.constant 0 : index
    %10 = vector.load %arg2[%c32, %c0_5] : memref<288x128xbf16, #tpu.memory_space<vmem>>, vector<128x128xbf16>
    %cst_6 = arith.constant dense<0.000000e+00> : vector<512x128xf32>
    %11 = tpu.matmul %9, %10, %cst_6 {dimension_numbers = #tpu.dot_dimension_numbers<[1], [0], [0], [1], [0, 0, 1, 1], [], []>} : vector<512x128xbf16>, vector<128x128xbf16>, vector<512x128xf32> -> vector<512x128xf32>
    %c132 = arith.constant 132 : index
    %c0_7 = arith.constant 0 : index
    %12 = vector.load %arg3[%c132, %c0_7] : memref<136x256xf32, #tpu.memory_space<vmem>>, vector<1x128xf32>
    %13 = vector.broadcast %12 : vector<1x128xf32> to vector<512x128xf32>
    %14 = arith.addf %11, %13 : vector<512x128xf32>
    %cst_8 = arith.constant 0.000000e+00 : f32
    %15 = vector.broadcast %cst_8 : f32 to vector<512x128xf32>
    %16 = arith.maximumf %14, %15 : vector<512x128xf32>
    %17 = arith.truncf %16 : vector<512x128xf32> to vector<512x128xbf16>
    %c160 = arith.constant 160 : index
    %c0_9 = arith.constant 0 : index
    %18 = vector.load %arg2[%c160, %c0_9] : memref<288x128xbf16, #tpu.memory_space<vmem>>, vector<128x128xbf16>
    %cst_10 = arith.constant dense<0.000000e+00> : vector<512x128xf32>
    %19 = tpu.matmul %17, %18, %cst_10 {dimension_numbers = #tpu.dot_dimension_numbers<[1], [0], [0], [1], [0, 0, 1, 1], [], []>} : vector<512x128xbf16>, vector<128x128xbf16>, vector<512x128xf32> -> vector<512x128xf32>
    %c133 = arith.constant 133 : index
    %c0_11 = arith.constant 0 : index
    %20 = vector.load %arg3[%c133, %c0_11] : memref<136x256xf32, #tpu.memory_space<vmem>>, vector<1x128xf32>
    %21 = vector.broadcast %20 : vector<1x128xf32> to vector<512x128xf32>
    %22 = arith.addf %19, %21 : vector<512x128xf32>
    %cst_12 = arith.constant 0.000000e+00 : f32
    %23 = vector.broadcast %cst_12 : f32 to vector<512x128xf32>
    %24 = arith.maximumf %22, %23 : vector<512x128xf32>
    %25 = vector.shape_cast %24 : vector<512x128xf32> to vector<16x32x128xf32>
    %cst_13 = arith.constant dense<0xFF800000> : vector<16x128xf32>
    %26 = vector.multi_reduction <maximumf>, %25, %cst_13 [1] : vector<16x32x128xf32> to vector<16x128xf32>
    %c0_14 = arith.constant 0 : index
    %c0_15 = arith.constant 0 : index
    %27 = vector.load %arg3[%c0_14, %c0_15] : memref<136x256xf32, #tpu.memory_space<vmem>>, vector<128x256xf32>
    %cst_16 = arith.constant dense<0.000000e+00> : vector<16x256xf32>
    %28 = tpu.matmul %26, %27, %cst_16 {dimension_numbers = #tpu.dot_dimension_numbers<[1], [0], [0], [1], [0, 0, 1, 1], [], []>} : vector<16x128xf32>, vector<128x256xf32>, vector<16x256xf32> -> vector<16x256xf32>
    %c0_17 = arith.constant 0 : index
    %c0_18 = arith.constant 0 : index
    %29 = vector.load %arg1[%c0_17, %c0_18] : memref<16x4xf32, #tpu.memory_space<vmem>>, vector<16x3xf32>
    %c0_19 = arith.constant 0 : index
    %c3 = arith.constant 3 : index
    %30 = vector.load %arg1[%c0_19, %c3] : memref<16x4xf32, #tpu.memory_space<vmem>>, vector<16x1xf32>
    %31 = vector.extract_strided_slice %29 {offsets = [0, 0], sizes = [16, 1], strides = [1, 1]} : vector<16x3xf32> to vector<16x1xf32>
    %c128 = arith.constant 128 : index
    %c0_20 = arith.constant 0 : index
    %32 = vector.load %arg3[%c128, %c0_20] : memref<136x256xf32, #tpu.memory_space<vmem>>, vector<1x256xf32>
    %33 = vector.broadcast %31 : vector<16x1xf32> to vector<16x256xf32>
    %34 = vector.broadcast %32 : vector<1x256xf32> to vector<16x256xf32>
    %35 = arith.mulf %33, %34 : vector<16x256xf32>
    %36 = arith.addf %28, %35 : vector<16x256xf32>
    %37 = vector.extract_strided_slice %29 {offsets = [0, 1], sizes = [16, 1], strides = [1, 1]} : vector<16x3xf32> to vector<16x1xf32>
    %c129 = arith.constant 129 : index
    %c0_21 = arith.constant 0 : index
    %38 = vector.load %arg3[%c129, %c0_21] : memref<136x256xf32, #tpu.memory_space<vmem>>, vector<1x256xf32>
    %39 = vector.broadcast %37 : vector<16x1xf32> to vector<16x256xf32>
    %40 = vector.broadcast %38 : vector<1x256xf32> to vector<16x256xf32>
    %41 = arith.mulf %39, %40 : vector<16x256xf32>
    %42 = arith.addf %36, %41 : vector<16x256xf32>
    %43 = vector.extract_strided_slice %29 {offsets = [0, 2], sizes = [16, 1], strides = [1, 1]} : vector<16x3xf32> to vector<16x1xf32>
    %c130 = arith.constant 130 : index
    %c0_22 = arith.constant 0 : index
    %44 = vector.load %arg3[%c130, %c0_22] : memref<136x256xf32, #tpu.memory_space<vmem>>, vector<1x256xf32>
    %45 = vector.broadcast %43 : vector<16x1xf32> to vector<16x256xf32>
    %46 = vector.broadcast %44 : vector<1x256xf32> to vector<16x256xf32>
    %47 = arith.mulf %45, %46 : vector<16x256xf32>
    %48 = arith.addf %42, %47 : vector<16x256xf32>
    %c134 = arith.constant 134 : index
    %c0_23 = arith.constant 0 : index
    %49 = vector.load %arg3[%c134, %c0_23] : memref<136x256xf32, #tpu.memory_space<vmem>>, vector<1x256xf32>
    %50 = vector.broadcast %49 : vector<1x256xf32> to vector<16x256xf32>
    %51 = arith.addf %48, %50 : vector<16x256xf32>
    %cst_24 = arith.constant 0.000000e+00 : f32
    %52 = vector.broadcast %cst_24 : f32 to vector<16x256xf32>
    %53 = arith.maximumf %51, %52 : vector<16x256xf32>
    %c135 = arith.constant 135 : index
    %c0_25 = arith.constant 0 : index
    %54 = vector.load %arg3[%c135, %c0_25] : memref<136x256xf32, #tpu.memory_space<vmem>>, vector<1x256xf32>
    %55 = vector.broadcast %54 : vector<1x256xf32> to vector<16x256xf32>
    %56 = arith.mulf %53, %55 : vector<16x256xf32>
    %cst_26 = arith.constant dense<0.000000e+00> : vector<16xf32>
    %57 = vector.multi_reduction <add>, %56, %cst_26 [1] : vector<16x256xf32> to vector<16xf32>
    %58 = vector.shape_cast %57 : vector<16xf32> to vector<16x1xf32>
    %c0_27 = arith.constant 0 : index
    %c0_28 = arith.constant 0 : index
    %59 = memref.load %arg4[%c0_27, %c0_28] : memref<1x1xf32, #tpu.memory_space<smem>>
    %60 = vector.broadcast %59 : f32 to vector<16x1xf32>
    %61 = arith.addf %58, %60 : vector<16x1xf32>
    %cst_29 = arith.constant 1.000000e+00 : f32
    %62 = vector.broadcast %cst_29 : f32 to vector<16x1xf32>
    %63 = arith.subf %62, %30 : vector<16x1xf32>
    %cst_30 = arith.constant -9.999000e+03 : f32
    %64 = vector.broadcast %cst_30 : f32 to vector<16x1xf32>
    %65 = arith.mulf %63, %64 : vector<16x1xf32>
    %66 = arith.addf %61, %65 : vector<16x1xf32>
    %c0_31 = arith.constant 0 : index
    %c0_32 = arith.constant 0 : index
    %67 = vector.load %arg5[%c0_31, %c0_32] : memref<16x1xf32, #tpu.memory_space<vmem>>, vector<16x1xf32>
    tpu.vector_store %arg5[%c0_31, %c0_32], %66 {strides = array<i32>} : memref<16x1xf32, #tpu.memory_space<vmem>>, vector<16x1xf32>,
    return
  }
}

</mosaic_0001>

<llo_original>
// kernel: vilbert3d_forward.1
$region0: #{vilbert3d_forward.1}
  #allocation0 [shape = 'u32[]', space=smem, size = 0x4, offset = 0x4, fixed_abs, tag = 'smem constant byte address 0x4 - core index']
  #allocation1 [shape = 'u32[144,128]{1,0:T(1,128)}', space=vmem, size = 0x12000, scoped, tag = 'internal scratch']
  #allocation2 [shape = 'f32[1,1]{1,0:T(1,128)S(6)}', space=smem, size = 0x200, scoped, tag = 'scoped memory for vilbert3d_forward.1']
  %s0 = inlined_call_operand.vmem [shape: f32[512,20], index: 0, kind: input, shape index: {}]
  %s1 = inlined_call_operand.vmem [shape: f32[16,4], index: 1, kind: input, shape index: {}]
  %s2 = inlined_call_operand.vmem [shape: bf16[288,128], index: 2, kind: input, shape index: {}]
  %s3 = inlined_call_operand.vmem [shape: f32[136,256], index: 3, kind: input, shape index: {}]
  %s4 = inlined_call_operand.<no memory space> [shape: f32[1,1], index: 4, kind: input, shape index: {}]
  %s5 = inlined_call_operand.vmem [shape: f32[16,1], index: 5, kind: output, shape index: {}]
  %s6 = sld [smem:[#allocation0]]
  $region30: #{vilbert3d_forward.1} parent=0
    _
  %s8 = ssub.s32 1, %s6
  %s9 = scalar_select 0, %s8, %s6
  %10 = sst [smem:[#allocation2]] %s4
  // Predicated region
  $region2: #{vilbert3d_forward.1} parent=0 // pred_check
    _
  $region3: #{vilbert3d_forward.1} parent=0 // pred_check_branch
    %12 = sbr.rel (0) target = $region5
  $region4: #{vilbert3d_forward.1} parent=0 // pred_region
    _
  $region5: #{vilbert3d_forward.1} parent=0 // pred_fallthru
    _
  // Predicated region
  $region6: #{vilbert3d_forward.1} parent=0 // pred_check
    _
  $region7: #{vilbert3d_forward.1} parent=0 // pred_check_branch
    %14 = sbr.rel (0) target = $region9
  $region8: #{vilbert3d_forward.1} parent=0 // pred_region
    _
  $region9: #{vilbert3d_forward.1} parent=0 // pred_fallthru
    _
  // Predicated region
  $region10: #{vilbert3d_forward.1} parent=0 // pred_check
    _
  $region11: #{vilbert3d_forward.1} parent=0 // pred_check_branch
    %16 = sbr.rel (0) target = $region13
  $region12: #{vilbert3d_forward.1} parent=0 // pred_region
    _
  $region13: #{vilbert3d_forward.1} parent=0 // pred_fallthru
    _
  // Predicated region
  $region14: #{vilbert3d_forward.1} parent=0 // pred_check
    _
  $region15: #{vilbert3d_forward.1} parent=0 // pred_check_branch
    %18 = sbr.rel (0) target = $region17
  $region16: #{vilbert3d_forward.1} parent=0 // pred_region
    _
  $region17: #{vilbert3d_forward.1} parent=0 // pred_fallthru
    _
  // Predicated region
  $region18: #{vilbert3d_forward.1} parent=0 // pred_check
    _
  $region19: #{vilbert3d_forward.1} parent=0 // pred_check_branch
    %20 = sbr.rel (0) target = $region21
  $region20: #{vilbert3d_forward.1} parent=0 // pred_region
    _
  $region21: #{vilbert3d_forward.1} parent=0 // pred_fallthru
    _
  %v22 = vld [vmem:[%s0] sm:$0xff]
  %v23 = vld [vmem:[%s0 + $0x8] sm:$0xff]
  %v24 = vld [vmem:[%s0 + $0x10] sm:$0xff]
  %v25 = vld [vmem:[%s0 + $0x18] sm:$0xff]
  %v26 = vld [vmem:[%s0 + $0x20] sm:$0xff]
  %v27 = vld [vmem:[%s0 + $0x28] sm:$0xff]
  %v28 = vld [vmem:[%s0 + $0x30] sm:$0xff]
  %v29 = vld [vmem:[%s0 + $0x38] sm:$0xff]
  %v30 = vld [vmem:[%s0 + $0x40] sm:$0xff]
  %v31 = vld [vmem:[%s0 + $0x48] sm:$0xff]
  %v32 = vld [vmem:[%s0 + $0x50] sm:$0xff]
  %v33 = vld [vmem:[%s0 + $0x58] sm:$0xff]
  %v34 = vld [vmem:[%s0 + $0x60] sm:$0xff]
  %v35 = vld [vmem:[%s0 + $0x68] sm:$0xff]
  %v36 = vld [vmem:[%s0 + $0x70] sm:$0xff]
  %v37 = vld [vmem:[%s0 + $0x78] sm:$0xff]
  %v38 = vld [vmem:[%s0 + $0x80] sm:$0xff]
  %v39 = vld [vmem:[%s0 + $0x88] sm:$0xff]
  %v40 = vld [vmem:[%s0 + $0x90] sm:$0xff]
  %v41 = vld [vmem:[%s0 + $0x98] sm:$0xff]
  %v42 = vld [vmem:[%s0 + $0xa0] sm:$0xff]
  %v43 = vld [vmem:[%s0 + $0xa8] sm:$0xff]
  %v44 = vld [vmem:[%s0 + $0xb0] sm:$0xff]
  %v45 = vld [vmem:[%s0 + $0xb8] sm:$0xff]
  %v46 = vld [vmem:[%s0 + $0xc0] sm:$0xff]
  %v47 = vld [vmem:[%s0 + $0xc8] sm:$0xff]
  %v48 = vld [vmem:[%s0 + $0xd0] sm:$0xff]
  %v49 = vld [vmem:[%s0 + $0xd8] sm:$0xff]
  %v50 = vld [vmem:[%s0 + $0xe0] sm:$0xff]
  %v51 = vld [vmem:[%s0 + $0xe8] sm:$0xff]
  %v52 = vld [vmem:[%s0 + $0xf0] sm:$0xff]
  %v53 = vld [vmem:[%s0 + $0xf8] sm:$0xff]
  %v54 = vld [vmem:[%s0 + $0x100] sm:$0xff]
  %v55 = vld [vmem:[%s0 + $0x108] sm:$0xff]
  %v56 = vld [vmem:[%s0 + $0x110] sm:$0xff]
  %v57 = vld [vmem:[%s0 + $0x118] sm:$0xff]
  %v58 = vld [vmem:[%s0 + $0x120] sm:$0xff]
  %v59 = vld [vmem:[%s0 + $0x128] sm:$0xff]
  %v60 = vld [vmem:[%s0 + $0x130] sm:$0xff]
  %v61 = vld [vmem:[%s0 + $0x138] sm:$0xff]
  %v62 = vld [vmem:[%s0 + $0x140] sm:$0xff]
  %v63 = vld [vmem:[%s0 + $0x148] sm:$0xff]
  %v64 = vld [vmem:[%s0 + $0x150] sm:$0xff]
  %v65 = vld [vmem:[%s0 + $0x158] sm:$0xff]
  %v66 = vld [vmem:[%s0 + $0x160] sm:$0xff]
  %v67 = vld [vmem:[%s0 + $0x168] sm:$0xff]
  %v68 = vld [vmem:[%s0 + $0x170] sm:$0xff]
  %v69 = vld [vmem:[%s0 + $0x178] sm:$0xff]
  %v70 = vld [vmem:[%s0 + $0x180] sm:$0xff]
  %v71 = vld [vmem:[%s0 + $0x188] sm:$0xff]
  %v72 = vld [vmem:[%s0 + $0x190] sm:$0xff]
  %v73 = vld [vmem:[%s0 + $0x198] sm:$0xff]
  %v74 = vld [vmem:[%s0 + $0x1a0] sm:$0xff]
  %v75 = vld [vmem:[%s0 + $0x1a8] sm:$0xff]
  %v76 = vld [vmem:[%s0 + $0x1b0] sm:$0xff]
  %v77 = vld [vmem:[%s0 + $0x1b8] sm:$0xff]
  %v78 = vld [vmem:[%s0 + $0x1c0] sm:$0xff]
  %v79 = vld [vmem:[%s0 + $0x1c8] sm:$0xff]
  %v80 = vld [vmem:[%s0 + $0x1d0] sm:$0xff]
  %v81 = vld [vmem:[%s0 + $0x1d8] sm:$0xff]
  %v82 = vld [vmem:[%s0 + $0x1e0] sm:$0xff]
  %v83 = vld [vmem:[%s0 + $0x1e8] sm:$0xff]
  %v84 = vld [vmem:[%s0 + $0x1f0] sm:$0xff]
  %v85 = vld [vmem:[%s0 + $0x1f8] sm:$0xff]
  %v86 = vpack.c.bf16 %v23, %v22
  %v87 = vpack.c.bf16 %v25, %v24
  %v88 = vpack.c.bf16 %v27, %v26
  %v89 = vpack.c.bf16 %v29, %v28
  %v90 = vpack.c.bf16 %v31, %v30
  %v91 = vpack.c.bf16 %v33, %v32
  %v92 = vpack.c.bf16 %v35, %v34
  %v93 = vpack.c.bf16 %v37, %v36
  %v94 = vpack.c.bf16 %v39, %v38
  %v95 = vpack.c.bf16 %v41, %v40
  %v96 = vpack.c.bf16 %v43, %v42
  %v97 = vpack.c.bf16 %v45, %v44
  %v98 = vpack.c.bf16 %v47, %v46
  %v99 = vpack.c.bf16 %v49, %v48
  %v100 = vpack.c.bf16 %v51, %v50
  %v101 = vpack.c.bf16 %v53, %v52
  %v102 = vpack.c.bf16 %v55, %v54
  %v103 = vpack.c.bf16 %v57, %v56
  %v104 = vpack.c.bf16 %v59, %v58
  %v105 = vpack.c.bf16 %v61, %v60
  %v106 = vpack.c.bf16 %v63, %v62
  %v107 = vpack.c.bf16 %v65, %v64
  %v108 = vpack.c.bf16 %v67, %v66
  %v109 = vpack.c.bf16 %v69, %v68
  %v110 = vpack.c.bf16 %v71, %v70
  %v111 = vpack.c.bf16 %v73, %v72
  %v112 = vpack.c.bf16 %v75, %v74
  %v113 = vpack.c.bf16 %v77, %v76
  %v114 = vpack.c.bf16 %v79, %v78
  %v115 = vpack.c.bf16 %v81, %v80
  %v116 = vpack.c.bf16 %v83, %v82
  %v117 = vpack.c.bf16 %v85, %v84
  %v118 = vld [vmem:[%s2] sm:$0xf]
  %v119 = vld [vmem:[%s2 + $0x4] sm:$0xf]
  %v120 = vld [vmem:[%s2 + $0x8] sm:$0x3]
  %v121 = vld [vmem:[%s3 + $0x103] ss:$0 sm:$0xff]
  %v125 = vunpack.c.l.b16 %v118
  %v126 = vunpack.c.l.b16 %v119
  %v127 = vunpack.c.l.b16 %v120
  %v128 = vpack.c.b16 %v126, %v125
  %v129 = vpack.c.b16 %v127, %v127
  %vm131 = vcmask 162816
  %v133 = vsel %vm131, %v86, 0
  %v136 = vsel %vm131, %v87, 0
  %v139 = vsel %vm131, %v88, 0
  %v142 = vsel %vm131, %v89, 0
  %v145 = vsel %vm131, %v90, 0
  %v148 = vsel %vm131, %v91, 0
  %v151 = vsel %vm131, %v92, 0
  %v154 = vsel %vm131, %v93, 0
  %v157 = vsel %vm131, %v94, 0
  %v160 = vsel %vm131, %v95, 0
  %v163 = vsel %vm131, %v96, 0
  %v166 = vsel %vm131, %v97, 0
  %v169 = vsel %vm131, %v98, 0
  %v172 = vsel %vm131, %v99, 0
  %v175 = vsel %vm131, %v100, 0
  %v178 = vsel %vm131, %v101, 0
  %v181 = vsel %vm131, %v102, 0
  %v184 = vsel %vm131, %v103, 0
  %v187 = vsel %vm131, %v104, 0
  %v190 = vsel %vm131, %v105, 0
  %v193 = vsel %vm131, %v106, 0
  %v196 = vsel %vm131, %v107, 0
  %v199 = vsel %vm131, %v108, 0
  %v202 = vsel %vm131, %v109, 0
  %v205 = vsel %vm131, %v110, 0
  %v208 = vsel %vm131, %v111, 0
  %v211 = vsel %vm131, %v112, 0
  %v214 = vsel %vm131, %v113, 0
  %v217 = vsel %vm131, %v114, 0
  %v220 = vsel %vm131, %v115, 0
  %v223 = vsel %vm131, %v116, 0
  %v226 = vsel %vm131, %v117, 0
  %vm228 = vcmask 1041408
  %v230 = vsel %vm228, %v129, 0
  %232 = vmatprep.subr.bf16.mxu0 0
  %233 = vmatpush1.bf16.msra.mxu0 0
  %234 = vmatprep.subr.bf16.mxu0 0
  %235 = vmatpush1.bf16.msra.mxu0 0
  %236 = vmatprep.subr.bf16.mxu0 0
  %237 = vmatpush1.bf16.msra.mxu0 0
  %238 = vmatprep.subr.bf16.mxu0 0
  %239 = vmatpush1.bf16.msra.mxu0 0
  %240 = vmatprep.subr.bf16.mxu0 0
  %241 = vmatpush1.bf16.msra.mxu0 0
  %242 = vmatprep.subr.bf16.mxu0 0
  %243 = vmatpush1.bf16.msra.mxu0 0
  %244 = vmatprep.subr.bf16.mxu0 0
  %245 = vmatpush1.bf16.msra.mxu0 %v230
  %246 = vmatprep.subr.bf16.mxu0 0
  %247 = vmatpush1.bf16.msra.mxu0 %v128
  %248 = vmatprep.subr.bf16.mxu0 0
  %249 = vmatpush2.bf16.msra.mxu0 0
  %250 = vmatprep.subr.bf16.mxu0 0
  %251 = vmatpush2.bf16.msra.mxu0 0
  %252 = vmatprep.subr.bf16.mxu0 0
  %253 = vmatpush2.bf16.msra.mxu0 0
  %254 = vmatprep.subr.bf16.mxu0 0
  %255 = vmatpush2.bf16.msra.mxu0 0
  %256 = vmatprep.subr.bf16.mxu0 0
  %257 = vmatpush2.bf16.msra.mxu0 0
  %258 = vmatprep.subr.bf16.mxu0 0
  %259 = vmatpush2.bf16.msra.mxu0 0
  %260 = vmatprep.subr.bf16.mxu0 0
  %261 = vmatpush2.bf16.msra.mxu0 0
  %262 = vmatprep.subr.bf16.mxu0 0
  %263 = vmatpush2.bf16.msra.mxu0 0
  %264 = vmatprep.mubr.bf16.mxu0 0
  %265 = vmatmul.mubr.bf16.gmra.mxu0 %v133
  %v266 = vpop.f32.mrf.mxu0
  %v267 = vadd.f32 %v121, %v266
  %v268 = vpop.f32.mrf.mxu0
  %v269 = vpop.f32.mrf.mxu0
  %v270 = vadd.f32 %v121, %v269
  %v271 = vpop.f32.mrf.mxu0
  %272 = vmatprep.mubr.bf16.mxu0 0
  %273 = vmatmul.mubr.bf16.gmra.mxu0 %v136
  %v274 = vpop.f32.mrf.mxu0
  %v275 = vadd.f32 %v121, %v274
  %v276 = vpop.f32.mrf.mxu0
  %v277 = vpop.f32.mrf.mxu0
  %v278 = vadd.f32 %v121, %v277
  %v279 = vpop.f32.mrf.mxu0
  %280 = vmatprep.mubr.bf16.mxu0 0
  %281 = vmatmul.mubr.bf16.gmra.mxu0 %v139
  %v282 = vpop.f32.mrf.mxu0
  %v283 = vadd.f32 %v121, %v282
  %v284 = vpop.f32.mrf.mxu0
  %v285 = vpop.f32.mrf.mxu0
  %v286 = vadd.f32 %v121, %v285
  %v287 = vpop.f32.mrf.mxu0
  %288 = vmatprep.mubr.bf16.mxu0 0
  %289 = vmatmul.mubr.bf16.gmra.mxu0 %v142
  %v290 = vpop.f32.mrf.mxu0
  %v291 = vadd.f32 %v121, %v290
  %v292 = vpop.f32.mrf.mxu0
  %v293 = vpop.f32.mrf.mxu0
  %v294 = vadd.f32 %v121, %v293
  %v295 = vpop.f32.mrf.mxu0
  %296 = vmatprep.mubr.bf16.mxu0 0
  %297 = vmatmul.mubr.bf16.gmra.mxu0 %v145
  %v298 = vpop.f32.mrf.mxu0
  %v299 = vadd.f32 %v121, %v298
  %v300 = vpop.f32.mrf.mxu0
  %v301 = vpop.f32.mrf.mxu0
  %v302 = vadd.f32 %v121, %v301
  %v303 = vpop.f32.mrf.mxu0
  %304 = vmatprep.mubr.bf16.mxu0 0
  %305 = vmatmul.mubr.bf16.gmra.mxu0 %v148
  %v306 = vpop.f32.mrf.mxu0
  %v307 = vadd.f32 %v121, %v306
  %v308 = vpop.f32.mrf.mxu0
  %v309 = vpop.f32.mrf.mxu0
  %v310 = vadd.f32 %v121, %v309
  %v311 = vpop.f32.mrf.mxu0
  %312 = vmatprep.mubr.bf16.mxu0 0
  %313 = vmatmul.mubr.bf16.gmra.mxu0 %v151
  %v314 = vpop.f32.mrf.mxu0
  %v315 = vadd.f32 %v121, %v314
  %v316 = vpop.f32.mrf.mxu0
  %v317 = vpop.f32.mrf.mxu0
  %v318 = vadd.f32 %v121, %v317
  %v319 = vpop.f32.mrf.mxu0
  %320 = vmatprep.mubr.bf16.mxu0 0
  %321 = vmatmul.mubr.bf16.gmra.mxu0 %v154
  %v322 = vpop.f32.mrf.mxu0
  %v323 = vadd.f32 %v121, %v322
  %v324 = vpop.f32.mrf.mxu0
  %v325 = vpop.f32.mrf.mxu0
  %v326 = vadd.f32 %v121, %v325
  %v327 = vpop.f32.mrf.mxu0
  %328 = vmatprep.mubr.bf16.mxu0 0
  %329 = vmatmul.mubr.bf16.gmra.mxu0 %v157
  %v330 = vpop.f32.mrf.mxu0
  %v331 = vadd.f32 %v121, %v330
  %v332 = vpop.f32.mrf.mxu0
  %v333 = vpop.f32.mrf.mxu0
  %v334 = vadd.f32 %v121, %v333
  %v335 = vpop.f32.mrf.mxu0
  %336 = vmatprep.mubr.bf16.mxu0 0
  %337 = vmatmul.mubr.bf16.gmra.mxu0 %v160
  %v338 = vpop.f32.mrf.mxu0
  %v339 = vadd.f32 %v121, %v338
  %v340 = vpop.f32.mrf.mxu0
  %v341 = vpop.f32.mrf.mxu0
  %v342 = vadd.f32 %v121, %v341
  %v343 = vpop.f32.mrf.mxu0
  %344 = vmatprep.mubr.bf16.mxu0 0
  %345 = vmatmul.mubr.bf16.gmra.mxu0 %v163
  %v346 = vpop.f32.mrf.mxu0
  %v347 = vadd.f32 %v121, %v346
  %v348 = vpop.f32.mrf.mxu0
  %v349 = vpop.f32.mrf.mxu0
  %v350 = vadd.f32 %v121, %v349
  %v351 = vpop.f32.mrf.mxu0
  %352 = vmatprep.mubr.bf16.mxu0 0
  %353 = vmatmul.mubr.bf16.gmra.mxu0 %v166
  %v354 = vpop.f32.mrf.mxu0
  %v355 = vadd.f32 %v121, %v354
  %v356 = vpop.f32.mrf.mxu0
  %v357 = vpop.f32.mrf.mxu0
  %v358 = vadd.f32 %v121, %v357
  %v359 = vpop.f32.mrf.mxu0
  %360 = vmatprep.mubr.bf16.mxu0 0
  %361 = vmatmul.mubr.bf16.gmra.mxu0 %v169
  %v362 = vpop.f32.mrf.mxu0
  %v363 = vadd.f32 %v121, %v362
  %v364 = vpop.f32.mrf.mxu0
  %v365 = vpop.f32.mrf.mxu0
  %v366 = vadd.f32 %v121, %v365
  %v367 = vpop.f32.mrf.mxu0
  %368 = vmatprep.mubr.bf16.mxu0 0
  %369 = vmatmul.mubr.bf16.gmra.mxu0 %v172
  %v370 = vpop.f32.mrf.mxu0
  %v371 = vadd.f32 %v121, %v370
  %v372 = vpop.f32.mrf.mxu0
  %v373 = vpop.f32.mrf.mxu0
  %v374 = vadd.f32 %v121, %v373
  %v375 = vpop.f32.mrf.mxu0
  %376 = vmatprep.mubr.bf16.mxu0 0
  %377 = vmatmul.mubr.bf16.gmra.mxu0 %v175
  %v378 = vpop.f32.mrf.mxu0
  %v379 = vadd.f32 %v121, %v378
  %v380 = vpop.f32.mrf.mxu0
  %v381 = vpop.f32.mrf.mxu0
  %v382 = vadd.f32 %v121, %v381
  %v383 = vpop.f32.mrf.mxu0
  %384 = vmatprep.mubr.bf16.mxu0 0
  %385 = vmatmul.mubr.bf16.gmra.mxu0 %v178
  %v386 = vpop.f32.mrf.mxu0
  %v387 = vadd.f32 %v121, %v386
  %v388 = vpop.f32.mrf.mxu0
  %v389 = vpop.f32.mrf.mxu0
  %v390 = vadd.f32 %v121, %v389
  %v391 = vpop.f32.mrf.mxu0
  %392 = vmatprep.mubr.bf16.mxu0 0
  %393 = vmatmul.mubr.bf16.gmra.mxu0 %v181
  %v394 = vpop.f32.mrf.mxu0
  %v395 = vadd.f32 %v121, %v394
  %v396 = vpop.f32.mrf.mxu0
  %v397 = vpop.f32.mrf.mxu0
  %v398 = vadd.f32 %v121, %v397
  %v399 = vpop.f32.mrf.mxu0
  %400 = vmatprep.mubr.bf16.mxu0 0
  %401 = vmatmul.mubr.bf16.gmra.mxu0 %v184
  %v402 = vpop.f32.mrf.mxu0
  %v403 = vadd.f32 %v121, %v402
  %v404 = vpop.f32.mrf.mxu0
  %v405 = vpop.f32.mrf.mxu0
  %v406 = vadd.f32 %v121, %v405
  %v407 = vpop.f32.mrf.mxu0
  %408 = vmatprep.mubr.bf16.mxu0 0
  %409 = vmatmul.mubr.bf16.gmra.mxu0 %v187
  %v410 = vpop.f32.mrf.mxu0
  %v411 = vadd.f32 %v121, %v410
  %v412 = vpop.f32.mrf.mxu0
  %v413 = vpop.f32.mrf.mxu0
  %v414 = vadd.f32 %v121, %v413
  %v415 = vpop.f32.mrf.mxu0
  %416 = vmatprep.mubr.bf16.mxu0 0
  %417 = vmatmul.mubr.bf16.gmra.mxu0 %v190
  %v418 = vpop.f32.mrf.mxu0
  %v419 = vadd.f32 %v121, %v418
  %v420 = vpop.f32.mrf.mxu0
  %v421 = vpop.f32.mrf.mxu0
  %v422 = vadd.f32 %v121, %v421
  %v423 = vpop.f32.mrf.mxu0
  %424 = vmatprep.mubr.bf16.mxu0 0
  %425 = vmatmul.mubr.bf16.gmra.mxu0 %v193
  %v426 = vpop.f32.mrf.mxu0
  %v427 = vadd.f32 %v121, %v426
  %v428 = vpop.f32.mrf.mxu0
  %v429 = vpop.f32.mrf.mxu0
  %v430 = vadd.f32 %v121, %v429
  %v431 = vpop.f32.mrf.mxu0
  %432 = vmatprep.mubr.bf16.mxu0 0
  %433 = vmatmul.mubr.bf16.gmra.mxu0 %v196
  %v434 = vpop.f32.mrf.mxu0
  %v435 = vadd.f32 %v121, %v434
  %v436 = vpop.f32.mrf.mxu0
  %v437 = vpop.f32.mrf.mxu0
  %v438 = vadd.f32 %v121, %v437
  %v439 = vpop.f32.mrf.mxu0
  %440 = vmatprep.mubr.bf16.mxu0 0
  %441 = vmatmul.mubr.bf16.gmra.mxu0 %v199
  %v442 = vpop.f32.mrf.mxu0
  %v443 = vadd.f32 %v121, %v442
  %v444 = vpop.f32.mrf.mxu0
  %v445 = vpop.f32.mrf.mxu0
  %v446 = vadd.f32 %v121, %v445
  %v447 = vpop.f32.mrf.mxu0
  %448 = vmatprep.mubr.bf16.mxu0 0
  %449 = vmatmul.mubr.bf16.gmra.mxu0 %v202
  %v450 = vpop.f32.mrf.mxu0
  %v451 = vadd.f32 %v121, %v450
  %v452 = vpop.f32.mrf.mxu0
  %v453 = vpop.f32.mrf.mxu0
  %v454 = vadd.f32 %v121, %v453
  %v455 = vpop.f32.mrf.mxu0
  %456 = vmatprep.mubr.bf16.mxu0 0
  %457 = vmatmul.mubr.bf16.gmra.mxu0 %v205
  %v458 = vpop.f32.mrf.mxu0
  %v459 = vadd.f32 %v121, %v458
  %v460 = vpop.f32.mrf.mxu0
  %v461 = vpop.f32.mrf.mxu0
  %v462 = vadd.f32 %v121, %v461
  %v463 = vpop.f32.mrf.mxu0
  %464 = vmatprep.mubr.bf16.mxu0 0
  %465 = vmatmul.mubr.bf16.gmra.mxu0 %v208
  %v466 = vpop.f32.mrf.mxu0
  %v467 = vadd.f32 %v121, %v466
  %v468 = vpop.f32.mrf.mxu0
  %v469 = vpop.f32.mrf.mxu0
  %v470 = vadd.f32 %v121, %v469
  %v471 = vpop.f32.mrf.mxu0
  %472 = vmatprep.mubr.bf16.mxu0 0
  %473 = vmatmul.mubr.bf16.gmra.mxu0 %v211
  %v474 = vpop.f32.mrf.mxu0
  %v475 = vadd.f32 %v121, %v474
  %v476 = vpop.f32.mrf.mxu0
  %v477 = vpop.f32.mrf.mxu0
  %v478 = vadd.f32 %v121, %v477
  %v479 = vpop.f32.mrf.mxu0
  %480 = vmatprep.mubr.bf16.mxu0 0
  %481 = vmatmul.mubr.bf16.gmra.mxu0 %v214
  %v482 = vpop.f32.mrf.mxu0
  %v483 = vadd.f32 %v121, %v482
  %v484 = vpop.f32.mrf.mxu0
  %v485 = vpop.f32.mrf.mxu0
  %v486 = vadd.f32 %v121, %v485
  %v487 = vpop.f32.mrf.mxu0
  %488 = vmatprep.mubr.bf16.mxu0 0
  %489 = vmatmul.mubr.bf16.gmra.mxu0 %v217
  %v490 = vpop.f32.mrf.mxu0
  %v491 = vadd.f32 %v121, %v490
  %v492 = vpop.f32.mrf.mxu0
  %v493 = vpop.f32.mrf.mxu0
  %v494 = vadd.f32 %v121, %v493
  %v495 = vpop.f32.mrf.mxu0
  %496 = vmatprep.mubr.bf16.mxu0 0
  %497 = vmatmul.mubr.bf16.gmra.mxu0 %v220
  %v498 = vpop.f32.mrf.mxu0
  %v499 = vadd.f32 %v121, %v498
  %v500 = vpop.f32.mrf.mxu0
  %v501 = vpop.f32.mrf.mxu0
  %v502 = vadd.f32 %v121, %v501
  %v503 = vpop.f32.mrf.mxu0
  %504 = vmatprep.mubr.bf16.mxu0 0
  %505 = vmatmul.mubr.bf16.gmra.mxu0 %v223
  %v506 = vpop.f32.mrf.mxu0
  %v507 = vadd.f32 %v121, %v506
  %v508 = vpop.f32.mrf.mxu0
  %v509 = vpop.f32.mrf.mxu0
  %v510 = vadd.f32 %v121, %v509
  %v511 = vpop.f32.mrf.mxu0
  %512 = vmatprep.mubr.bf16.mxu0 0
  %513 = vmatmul.mubr.bf16.gmra.mxu0 %v226
  %v514 = vpop.f32.mrf.mxu0
  %v515 = vadd.f32 %v121, %v514
  %v516 = vpop.f32.mrf.mxu0
  %v517 = vpop.f32.mrf.mxu0
  %v518 = vadd.f32 %v121, %v517
  %v519 = vpop.f32.mrf.mxu0
  %520 = vdwg.mxu0
  %v521 = vmax.f32 %v267, 0.0
  %v522 = vmax.f32 %v270, 0.0
  %v523 = vmax.f32 %v275, 0.0
  %v524 = vmax.f32 %v278, 0.0
  %v525 = vmax.f32 %v283, 0.0
  %v526 = vmax.f32 %v286, 0.0
  %v527 = vmax.f32 %v291, 0.0
  %v528 = vmax.f32 %v294, 0.0
  %v529 = vmax.f32 %v299, 0.0
  %v530 = vmax.f32 %v302, 0.0
  %v531 = vmax.f32 %v307, 0.0
  %v532 = vmax.f32 %v310, 0.0
  %v533 = vmax.f32 %v315, 0.0
  %v534 = vmax.f32 %v318, 0.0
  %v535 = vmax.f32 %v323, 0.0
  %v536 = vmax.f32 %v326, 0.0
  %v537 = vmax.f32 %v331, 0.0
  %v538 = vmax.f32 %v334, 0.0
  %v539 = vmax.f32 %v339, 0.0
  %v540 = vmax.f32 %v342, 0.0
  %v541 = vmax.f32 %v347, 0.0
  %v542 = vmax.f32 %v350, 0.0
  %v543 = vmax.f32 %v355, 0.0
  %v544 = vmax.f32 %v358, 0.0
  %v545 = vmax.f32 %v363, 0.0
  %v546 = vmax.f32 %v366, 0.0
  %v547 = vmax.f32 %v371, 0.0
  %v548 = vmax.f32 %v374, 0.0
  %v549 = vmax.f32 %v379, 0.0
  %v550 = vmax.f32 %v382, 0.0
  %v551 = vmax.f32 %v387, 0.0
  %v552 = vmax.f32 %v390, 0.0
  %v553 = vmax.f32 %v395, 0.0
  %v554 = vmax.f32 %v398, 0.0
  %v555 = vmax.f32 %v403, 0.0
  %v556 = vmax.f32 %v406, 0.0
  %v557 = vmax.f32 %v411, 0.0
  %v558 = vmax.f32 %v414, 0.0
  %v559 = vmax.f32 %v419, 0.0
  %v560 = vmax.f32 %v422, 0.0
  %v561 = vmax.f32 %v427, 0.0
  %v562 = vmax.f32 %v430, 0.0
  %v563 = vmax.f32 %v435, 0.0
  %v564 = vmax.f32 %v438, 0.0
  %v565 = vmax.f32 %v443, 0.0
  %v566 = vmax.f32 %v446, 0.0
  %v567 = vmax.f32 %v451, 0.0
  %v568 = vmax.f32 %v454, 0.0
  %v569 = vmax.f32 %v459, 0.0
  %v570 = vmax.f32 %v462, 0.0
  %v571 = vmax.f32 %v467, 0.0
  %v572 = vmax.f32 %v470, 0.0
  %v573 = vmax.f32 %v475, 0.0
  %v574 = vmax.f32 %v478, 0.0
  %v575 = vmax.f32 %v483, 0.0
  %v576 = vmax.f32 %v486, 0.0
  %v577 = vmax.f32 %v491, 0.0
  %v578 = vmax.f32 %v494, 0.0
  %v579 = vmax.f32 %v499, 0.0
  %v580 = vmax.f32 %v502, 0.0
  %v581 = vmax.f32 %v507, 0.0
  %v582 = vmax.f32 %v510, 0.0
  %v583 = vmax.f32 %v515, 0.0
  %v584 = vmax.f32 %v518, 0.0
  %v585 = vpack.c.bf16 %v522, %v521
  %v586 = vpack.c.bf16 %v524, %v523
  %v587 = vpack.c.bf16 %v526, %v525
  %v588 = vpack.c.bf16 %v528, %v527
  %v589 = vpack.c.bf16 %v530, %v529
  %v590 = vpack.c.bf16 %v532, %v531
  %v591 = vpack.c.bf16 %v534, %v533
  %v592 = vpack.c.bf16 %v536, %v535
  %v593 = vpack.c.bf16 %v538, %v537
  %v594 = vpack.c.bf16 %v540, %v539
  %v595 = vpack.c.bf16 %v542, %v541
  %v596 = vpack.c.bf16 %v544, %v543
  %v597 = vpack.c.bf16 %v546, %v545
  %v598 = vpack.c.bf16 %v548, %v547
  %v599 = vpack.c.bf16 %v550, %v549
  %v600 = vpack.c.bf16 %v552, %v551
  %v601 = vpack.c.bf16 %v554, %v553
  %v602 = vpack.c.bf16 %v556, %v555
  %v603 = vpack.c.bf16 %v558, %v557
  %v604 = vpack.c.bf16 %v560, %v559
  %v605 = vpack.c.bf16 %v562, %v561
  %v606 = vpack.c.bf16 %v564, %v563
  %v607 = vpack.c.bf16 %v566, %v565
  %v608 = vpack.c.bf16 %v568, %v567
  %v609 = vpack.c.bf16 %v570, %v569
  %v610 = vpack.c.bf16 %v572, %v571
  %v611 = vpack.c.bf16 %v574, %v573
  %v612 = vpack.c.bf16 %v576, %v575
  %v613 = vpack.c.bf16 %v578, %v577
  %v614 = vpack.c.bf16 %v580, %v579
  %v615 = vpack.c.bf16 %v582, %v581
  %v616 = vpack.c.bf16 %v584, %v583
  %v617 = vld [vmem:[%s2 + $0x10] sm:$0xf]
  %v618 = vld [vmem:[%s2 + $0x14] sm:$0xf]
  %v619 = vld [vmem:[%s2 + $0x18] sm:$0xf]
  %v620 = vld [vmem:[%s2 + $0x1c] sm:$0xf]
  %v621 = vld [vmem:[%s2 + $0x20] sm:$0xf]
  %v622 = vld [vmem:[%s2 + $0x24] sm:$0xf]
  %v623 = vld [vmem:[%s2 + $0x28] sm:$0xf]
  %v624 = vld [vmem:[%s2 + $0x2c] sm:$0xf]
  %v625 = vld [vmem:[%s2 + $0x30] sm:$0xf]
  %v626 = vld [vmem:[%s2 + $0x34] sm:$0xf]
  %v627 = vld [vmem:[%s2 + $0x38] sm:$0xf]
  %v628 = vld [vmem:[%s2 + $0x3c] sm:$0xf]
  %v629 = vld [vmem:[%s2 + $0x40] sm:$0xf]
  %v630 = vld [vmem:[%s2 + $0x44] sm:$0xf]
  %v631 = vld [vmem:[%s2 + $0x48] sm:$0xf]
  %v632 = vld [vmem:[%s2 + $0x4c] sm:$0xf]
  %v633 = vld [vmem:[%s3 + $0x104] ss:$0 sm:$0xff]
  %v650 = vunpack.c.l.b16 %v617
  %v651 = vunpack.c.l.b16 %v618
  %v652 = vunpack.c.l.b16 %v619
  %v653 = vunpack.c.l.b16 %v620
  %v654 = vunpack.c.l.b16 %v621
  %v655 = vunpack.c.l.b16 %v622
  %v656 = vunpack.c.l.b16 %v623
  %v657 = vunpack.c.l.b16 %v624
  %v658 = vunpack.c.l.b16 %v625
  %v659 = vunpack.c.l.b16 %v626
  %v660 = vunpack.c.l.b16 %v627
  %v661 = vunpack.c.l.b16 %v628
  %v662 = vunpack.c.l.b16 %v629
  %v663 = vunpack.c.l.b16 %v630
  %v664 = vunpack.c.l.b16 %v631
  %v665 = vunpack.c.l.b16 %v632
  %v666 = vpack.c.b16 %v651, %v650
  %v667 = vpack.c.b16 %v653, %v652
  %v668 = vpack.c.b16 %v655, %v654
  %v669 = vpack.c.b16 %v657, %v656
  %v670 = vpack.c.b16 %v659, %v658
  %v671 = vpack.c.b16 %v661, %v660
  %v672 = vpack.c.b16 %v663, %v662
  %v673 = vpack.c.b16 %v665, %v664
  %682 = vmatprep.subr.bf16.mxu0 0
  %683 = vmatpush1.bf16.msra.mxu0 %v673
  %684 = vmatprep.subr.bf16.mxu0 0
  %685 = vmatpush1.bf16.msra.mxu0 %v672
  %686 = vmatprep.subr.bf16.mxu0 0
  %687 = vmatpush1.bf16.msra.mxu0 %v671
  %688 = vmatprep.subr.bf16.mxu0 0
  %689 = vmatpush1.bf16.msra.mxu0 %v670
  %690 = vmatprep.subr.bf16.mxu0 0
  %691 = vmatpush1.bf16.msra.mxu0 %v669
  %692 = vmatprep.subr.bf16.mxu0 0
  %693 = vmatpush1.bf16.msra.mxu0 %v668
  %694 = vmatprep.subr.bf16.mxu0 0
  %695 = vmatpush1.bf16.msra.mxu0 %v667
  %696 = vmatprep.subr.bf16.mxu0 0
  %697 = vmatpush1.bf16.msra.mxu0 %v666
  %698 = vmatprep.subr.bf16.mxu0 0
  %699 = vmatpush2.bf16.msra.mxu0 0
  %700 = vmatprep.subr.bf16.mxu0 0
  %701 = vmatpush2.bf16.msra.mxu0 0
  %702 = vmatprep.subr.bf16.mxu0 0
  %703 = vmatpush2.bf16.msra.mxu0 0
  %704 = vmatprep.subr.bf16.mxu0 0
  %705 = vmatpush2.bf16.msra.mxu0 0
  %706 = vmatprep.subr.bf16.mxu0 0
  %707 = vmatpush2.bf16.msra.mxu0 0
  %708 = vmatprep.subr.bf16.mxu0 0
  %709 = vmatpush2.bf16.msra.mxu0 0
  %710 = vmatprep.subr.bf16.mxu0 0
  %711 = vmatpush2.bf16.msra.mxu0 0
  %712 = vmatprep.subr.bf16.mxu0 0
  %713 = vmatpush2.bf16.msra.mxu0 0
  %714 = vmatprep.mubr.bf16.mxu0 0
  %715 = vmatmul.mubr.bf16.gmra.mxu0 %v585
  %v716 = vpop.f32.mrf.mxu0
  %v717 = vadd.f32 %v633, %v716
  %v718 = vpop.f32.mrf.mxu0
  %v719 = vpop.f32.mrf.mxu0
  %v720 = vadd.f32 %v633, %v719
  %v721 = vpop.f32.mrf.mxu0
  %722 = vmatprep.mubr.bf16.mxu0 0
  %723 = vmatmul.mubr.bf16.gmra.mxu0 %v586
  %v724 = vpop.f32.mrf.mxu0
  %v725 = vadd.f32 %v633, %v724
  %v726 = vpop.f32.mrf.mxu0
  %v727 = vpop.f32.mrf.mxu0
  %v728 = vadd.f32 %v633, %v727
  %v729 = vpop.f32.mrf.mxu0
  %730 = vmatprep.mubr.bf16.mxu0 0
  %731 = vmatmul.mubr.bf16.gmra.mxu0 %v587
  %v732 = vpop.f32.mrf.mxu0
  %v733 = vadd.f32 %v633, %v732
  %v734 = vpop.f32.mrf.mxu0
  %v735 = vpop.f32.mrf.mxu0
  %v736 = vadd.f32 %v633, %v735
  %v737 = vpop.f32.mrf.mxu0
  %738 = vmatprep.mubr.bf16.mxu0 0
  %739 = vmatmul.mubr.bf16.gmra.mxu0 %v588
  %v740 = vpop.f32.mrf.mxu0
  %v741 = vadd.f32 %v633, %v740
  %v742 = vpop.f32.mrf.mxu0
  %v743 = vpop.f32.mrf.mxu0
  %v744 = vadd.f32 %v633, %v743
  %v745 = vpop.f32.mrf.mxu0
  %746 = vmatprep.mubr.bf16.mxu0 0
  %747 = vmatmul.mubr.bf16.gmra.mxu0 %v589
  %v748 = vpop.f32.mrf.mxu0
  %v749 = vadd.f32 %v633, %v748
  %v750 = vpop.f32.mrf.mxu0
  %v751 = vpop.f32.mrf.mxu0
  %v752 = vadd.f32 %v633, %v751
  %v753 = vpop.f32.mrf.mxu0
  %754 = vmatprep.mubr.bf16.mxu0 0
  %755 = vmatmul.mubr.bf16.gmra.mxu0 %v590
  %v756 = vpop.f32.mrf.mxu0
  %v757 = vadd.f32 %v633, %v756
  %v758 = vpop.f32.mrf.mxu0
  %v759 = vpop.f32.mrf.mxu0
  %v760 = vadd.f32 %v633, %v759
  %v761 = vpop.f32.mrf.mxu0
  %762 = vmatprep.mubr.bf16.mxu0 0
  %763 = vmatmul.mubr.bf16.gmra.mxu0 %v591
  %v764 = vpop.f32.mrf.mxu0
  %v765 = vadd.f32 %v633, %v764
  %v766 = vpop.f32.mrf.mxu0
  %v767 = vpop.f32.mrf.mxu0
  %v768 = vadd.f32 %v633, %v767
  %v769 = vpop.f32.mrf.mxu0
  %770 = vmatprep.mubr.bf16.mxu0 0
  %771 = vmatmul.mubr.bf16.gmra.mxu0 %v592
  %v772 = vpop.f32.mrf.mxu0
  %v773 = vadd.f32 %v633, %v772
  %v774 = vpop.f32.mrf.mxu0
  %v775 = vpop.f32.mrf.mxu0
  %v776 = vadd.f32 %v633, %v775
  %v777 = vpop.f32.mrf.mxu0
  %778 = vmatprep.mubr.bf16.mxu0 0
  %779 = vmatmul.mubr.bf16.gmra.mxu0 %v593
  %v780 = vpop.f32.mrf.mxu0
  %v781 = vadd.f32 %v633, %v780
  %v782 = vpop.f32.mrf.mxu0
  %v783 = vpop.f32.mrf.mxu0
  %v784 = vadd.f32 %v633, %v783
  %v785 = vpop.f32.mrf.mxu0
  %786 = vmatprep.mubr.bf16.mxu0 0
  %787 = vmatmul.mubr.bf16.gmra.mxu0 %v594
  %v788 = vpop.f32.mrf.mxu0
  %v789 = vadd.f32 %v633, %v788
  %v790 = vpop.f32.mrf.mxu0
  %v791 = vpop.f32.mrf.mxu0
  %v792 = vadd.f32 %v633, %v791
  %v793 = vpop.f32.mrf.mxu0
  %794 = vmatprep.mubr.bf16.mxu0 0
  %795 = vmatmul.mubr.bf16.gmra.mxu0 %v595
  %v796 = vpop.f32.mrf.mxu0
  %v797 = vadd.f32 %v633, %v796
  %v798 = vpop.f32.mrf.mxu0
  %v799 = vpop.f32.mrf.mxu0
  %v800 = vadd.f32 %v633, %v799
  %v801 = vpop.f32.mrf.mxu0
  %802 = vmatprep.mubr.bf16.mxu0 0
  %803 = vmatmul.mubr.bf16.gmra.mxu0 %v596
  %v804 = vpop.f32.mrf.mxu0
  %v805 = vadd.f32 %v633, %v804
  %v806 = vpop.f32.mrf.mxu0
  %v807 = vpop.f32.mrf.mxu0
  %v808 = vadd.f32 %v633, %v807
  %v809 = vpop.f32.mrf.mxu0
  %810 = vmatprep.mubr.bf16.mxu0 0
  %811 = vmatmul.mubr.bf16.gmra.mxu0 %v597
  %v812 = vpop.f32.mrf.mxu0
  %v813 = vadd.f32 %v633, %v812
  %v814 = vpop.f32.mrf.mxu0
  %v815 = vpop.f32.mrf.mxu0
  %v816 = vadd.f32 %v633, %v815
  %v817 = vpop.f32.mrf.mxu0
  %818 = vmatprep.mubr.bf16.mxu0 0
  %819 = vmatmul.mubr.bf16.gmra.mxu0 %v598
  %v820 = vpop.f32.mrf.mxu0
  %v821 = vadd.f32 %v633, %v820
  %v822 = vpop.f32.mrf.mxu0
  %v823 = vpop.f32.mrf.mxu0
  %v824 = vadd.f32 %v633, %v823
  %v825 = vpop.f32.mrf.mxu0
  %826 = vmatprep.mubr.bf16.mxu0 0
  %827 = vmatmul.mubr.bf16.gmra.mxu0 %v599
  %v828 = vpop.f32.mrf.mxu0
  %v829 = vadd.f32 %v633, %v828
  %v830 = vpop.f32.mrf.mxu0
  %v831 = vpop.f32.mrf.mxu0
  %v832 = vadd.f32 %v633, %v831
  %v833 = vpop.f32.mrf.mxu0
  %834 = vmatprep.mubr.bf16.mxu0 0
  %835 = vmatmul.mubr.bf16.gmra.mxu0 %v600
  %v836 = vpop.f32.mrf.mxu0
  %v837 = vadd.f32 %v633, %v836
  %v838 = vpop.f32.mrf.mxu0
  %v839 = vpop.f32.mrf.mxu0
  %v840 = vadd.f32 %v633, %v839
  %v841 = vpop.f32.mrf.mxu0
  %842 = vmatprep.mubr.bf16.mxu0 0
  %843 = vmatmul.mubr.bf16.gmra.mxu0 %v601
  %v844 = vpop.f32.mrf.mxu0
  %v845 = vadd.f32 %v633, %v844
  %v846 = vpop.f32.mrf.mxu0
  %v847 = vpop.f32.mrf.mxu0
  %v848 = vadd.f32 %v633, %v847
  %v849 = vpop.f32.mrf.mxu0
  %850 = vmatprep.mubr.bf16.mxu0 0
  %851 = vmatmul.mubr.bf16.gmra.mxu0 %v602
  %v852 = vpop.f32.mrf.mxu0
  %v853 = vadd.f32 %v633, %v852
  %v854 = vpop.f32.mrf.mxu0
  %v855 = vpop.f32.mrf.mxu0
  %v856 = vadd.f32 %v633, %v855
  %v857 = vpop.f32.mrf.mxu0
  %858 = vmatprep.mubr.bf16.mxu0 0
  %859 = vmatmul.mubr.bf16.gmra.mxu0 %v603
  %v860 = vpop.f32.mrf.mxu0
  %v861 = vadd.f32 %v633, %v860
  %v862 = vpop.f32.mrf.mxu0
  %v863 = vpop.f32.mrf.mxu0
  %v864 = vadd.f32 %v633, %v863
  %v865 = vpop.f32.mrf.mxu0
  %866 = vmatprep.mubr.bf16.mxu0 0
  %867 = vmatmul.mubr.bf16.gmra.mxu0 %v604
  %v868 = vpop.f32.mrf.mxu0
  %v869 = vadd.f32 %v633, %v868
  %v870 = vpop.f32.mrf.mxu0
  %v871 = vpop.f32.mrf.mxu0
  %v872 = vadd.f32 %v633, %v871
  %v873 = vpop.f32.mrf.mxu0
  %874 = vmatprep.mubr.bf16.mxu0 0
  %875 = vmatmul.mubr.bf16.gmra.mxu0 %v605
  %v876 = vpop.f32.mrf.mxu0
  %v877 = vadd.f32 %v633, %v876
  %v878 = vpop.f32.mrf.mxu0
  %v879 = vpop.f32.mrf.mxu0
  %v880 = vadd.f32 %v633, %v879
  %v881 = vpop.f32.mrf.mxu0
  %882 = vmatprep.mubr.bf16.mxu0 0
  %883 = vmatmul.mubr.bf16.gmra.mxu0 %v606
  %v884 = vpop.f32.mrf.mxu0
  %v885 = vadd.f32 %v633, %v884
  %v886 = vpop.f32.mrf.mxu0
  %v887 = vpop.f32.mrf.mxu0
  %v888 = vadd.f32 %v633, %v887
  %v889 = vpop.f32.mrf.mxu0
  %890 = vmatprep.mubr.bf16.mxu0 0
  %891 = vmatmul.mubr.bf16.gmra.mxu0 %v607
  %v892 = vpop.f32.mrf.mxu0
  %v893 = vadd.f32 %v633, %v892
  %v894 = vpop.f32.mrf.mxu0
  %v895 = vpop.f32.mrf.mxu0
  %v896 = vadd.f32 %v633, %v895
  %v897 = vpop.f32.mrf.mxu0
  %898 = vmatprep.mubr.bf16.mxu0 0
  %899 = vmatmul.mubr.bf16.gmra.mxu0 %v608
  %v900 = vpop.f32.mrf.mxu0
  %v901 = vadd.f32 %v633, %v900
  %v902 = vpop.f32.mrf.mxu0
  %v903 = vpop.f32.mrf.mxu0
  %v904 = vadd.f32 %v633, %v903
  %v905 = vpop.f32.mrf.mxu0
  %906 = vmatprep.mubr.bf16.mxu0 0
  %907 = vmatmul.mubr.bf16.gmra.mxu0 %v609
  %v908 = vpop.f32.mrf.mxu0
  %v909 = vadd.f32 %v633, %v908
  %v910 = vpop.f32.mrf.mxu0
  %v911 = vpop.f32.mrf.mxu0
  %v912 = vadd.f32 %v633, %v911
  %v913 = vpop.f32.mrf.mxu0
  %914 = vmatprep.mubr.bf16.mxu0 0
  %915 = vmatmul.mubr.bf16.gmra.mxu0 %v610
  %v916 = vpop.f32.mrf.mxu0
  %v917 = vadd.f32 %v633, %v916
  %v918 = vpop.f32.mrf.mxu0
  %v919 = vpop.f32.mrf.mxu0
  %v920 = vadd.f32 %v633, %v919
  %v921 = vpop.f32.mrf.mxu0
  %922 = vmatprep.mubr.bf16.mxu0 0
  %923 = vmatmul.mubr.bf16.gmra.mxu0 %v611
  %v924 = vpop.f32.mrf.mxu0
  %v925 = vadd.f32 %v633, %v924
  %v926 = vpop.f32.mrf.mxu0
  %v927 = vpop.f32.mrf.mxu0
  %v928 = vadd.f32 %v633, %v927
  %v929 = vpop.f32.mrf.mxu0
  %930 = vmatprep.mubr.bf16.mxu0 0
  %931 = vmatmul.mubr.bf16.gmra.mxu0 %v612
  %v932 = vpop.f32.mrf.mxu0
  %v933 = vadd.f32 %v633, %v932
  %v934 = vpop.f32.mrf.mxu0
  %v935 = vpop.f32.mrf.mxu0
  %v936 = vadd.f32 %v633, %v935
  %v937 = vpop.f32.mrf.mxu0
  %938 = vmatprep.mubr.bf16.mxu0 0
  %939 = vmatmul.mubr.bf16.gmra.mxu0 %v613
  %v940 = vpop.f32.mrf.mxu0
  %v941 = vadd.f32 %v633, %v940
  %v942 = vpop.f32.mrf.mxu0
  %v943 = vpop.f32.mrf.mxu0
  %v944 = vadd.f32 %v633, %v943
  %v945 = vpop.f32.mrf.mxu0
  %946 = vmatprep.mubr.bf16.mxu0 0
  %947 = vmatmul.mubr.bf16.gmra.mxu0 %v614
  %v948 = vpop.f32.mrf.mxu0
  %v949 = vadd.f32 %v633, %v948
  %v950 = vpop.f32.mrf.mxu0
  %v951 = vpop.f32.mrf.mxu0
  %v952 = vadd.f32 %v633, %v951
  %v953 = vpop.f32.mrf.mxu0
  %954 = vmatprep.mubr.bf16.mxu0 0
  %955 = vmatmul.mubr.bf16.gmra.mxu0 %v615
  %v956 = vpop.f32.mrf.mxu0
  %v957 = vadd.f32 %v633, %v956
  %v958 = vpop.f32.mrf.mxu0
  %v959 = vpop.f32.mrf.mxu0
  %v960 = vadd.f32 %v633, %v959
  %v961 = vpop.f32.mrf.mxu0
  %962 = vmatprep.mubr.bf16.mxu0 0
  %963 = vmatmul.mubr.bf16.gmra.mxu0 %v616
  %v964 = vpop.f32.mrf.mxu0
  %v965 = vadd.f32 %v633, %v964
  %v966 = vpop.f32.mrf.mxu0
  %v967 = vpop.f32.mrf.mxu0
  %v968 = vadd.f32 %v633, %v967
  %v969 = vpop.f32.mrf.mxu0
  %970 = vdwg.mxu0
  %v971 = vmax.f32 %v717, 0.0
  %v972 = vmax.f32 %v720, 0.0
  %v973 = vmax.f32 %v725, 0.0
  %v974 = vmax.f32 %v728, 0.0
  %v975 = vmax.f32 %v733, 0.0
  %v976 = vmax.f32 %v736, 0.0
  %v977 = vmax.f32 %v741, 0.0
  %v978 = vmax.f32 %v744, 0.0
  %v979 = vmax.f32 %v749, 0.0
  %v980 = vmax.f32 %v752, 0.0
  %v981 = vmax.f32 %v757, 0.0
  %v982 = vmax.f32 %v760, 0.0
  %v983 = vmax.f32 %v765, 0.0
  %v984 = vmax.f32 %v768, 0.0
  %v985 = vmax.f32 %v773, 0.0
  %v986 = vmax.f32 %v776, 0.0
  %v987 = vmax.f32 %v781, 0.0
  %v988 = vmax.f32 %v784, 0.0
  %v989 = vmax.f32 %v789, 0.0
  %v990 = vmax.f32 %v792, 0.0
  %v991 = vmax.f32 %v797, 0.0
  %v992 = vmax.f32 %v800, 0.0
  %v993 = vmax.f32 %v805, 0.0
  %v994 = vmax.f32 %v808, 0.0
  %v995 = vmax.f32 %v813, 0.0
  %v996 = vmax.f32 %v816, 0.0
  %v997 = vmax.f32 %v821, 0.0
  %v998 = vmax.f32 %v824, 0.0
  %v999 = vmax.f32 %v829, 0.0
  %v1000 = vmax.f32 %v832, 0.0
  %v1001 = vmax.f32 %v837, 0.0
  %v1002 = vmax.f32 %v840, 0.0
  %v1003 = vmax.f32 %v845, 0.0
  %v1004 = vmax.f32 %v848, 0.0
  %v1005 = vmax.f32 %v853, 0.0
  %v1006 = vmax.f32 %v856, 0.0
  %v1007 = vmax.f32 %v861, 0.0
  %v1008 = vmax.f32 %v864, 0.0
  %v1009 = vmax.f32 %v869, 0.0
  %v1010 = vmax.f32 %v872, 0.0
  %v1011 = vmax.f32 %v877, 0.0
  %v1012 = vmax.f32 %v880, 0.0
  %v1013 = vmax.f32 %v885, 0.0
  %v1014 = vmax.f32 %v888, 0.0
  %v1015 = vmax.f32 %v893, 0.0
  %v1016 = vmax.f32 %v896, 0.0
  %v1017 = vmax.f32 %v901, 0.0
  %v1018 = vmax.f32 %v904, 0.0
  %v1019 = vmax.f32 %v909, 0.0
  %v1020 = vmax.f32 %v912, 0.0
  %v1021 = vmax.f32 %v917, 0.0
  %v1022 = vmax.f32 %v920, 0.0
  %v1023 = vmax.f32 %v925, 0.0
  %v1024 = vmax.f32 %v928, 0.0
  %v1025 = vmax.f32 %v933, 0.0
  %v1026 = vmax.f32 %v936, 0.0
  %v1027 = vmax.f32 %v941, 0.0
  %v1028 = vmax.f32 %v944, 0.0
  %v1029 = vmax.f32 %v949, 0.0
  %v1030 = vmax.f32 %v952, 0.0
  %v1031 = vmax.f32 %v957, 0.0
  %v1032 = vmax.f32 %v960, 0.0
  %v1033 = vmax.f32 %v965, 0.0
  %v1034 = vmax.f32 %v968, 0.0
  %v1035 = vpack.c.bf16 %v972, %v971
  %v1036 = vpack.c.bf16 %v974, %v973
  %v1037 = vpack.c.bf16 %v976, %v975
  %v1038 = vpack.c.bf16 %v978, %v977
  %v1039 = vpack.c.bf16 %v980, %v979
  %v1040 = vpack.c.bf16 %v982, %v981
  %v1041 = vpack.c.bf16 %v984, %v983
  %v1042 = vpack.c.bf16 %v986, %v985
  %v1043 = vpack.c.bf16 %v988, %v987
  %v1044 = vpack.c.bf16 %v990, %v989
  %v1045 = vpack.c.bf16 %v992, %v991
  %v1046 = vpack.c.bf16 %v994, %v993
  %v1047 = vpack.c.bf16 %v996, %v995
  %v1048 = vpack.c.bf16 %v998, %v997
  %v1049 = vpack.c.bf16 %v1000, %v999
  %v1050 = vpack.c.bf16 %v1002, %v1001
  %v1051 = vpack.c.bf16 %v1004, %v1003
  %v1052 = vpack.c.bf16 %v1006, %v1005
  %v1053 = vpack.c.bf16 %v1008, %v1007
  %v1054 = vpack.c.bf16 %v1010, %v1009
  %v1055 = vpack.c.bf16 %v1012, %v1011
  %v1056 = vpack.c.bf16 %v1014, %v1013
  %v1057 = vpack.c.bf16 %v1016, %v1015
  %v1058 = vpack.c.bf16 %v1018, %v1017
  %v1059 = vpack.c.bf16 %v1020, %v1019
  %v1060 = vpack.c.bf16 %v1022, %v1021
  %v1061 = vpack.c.bf16 %v1024, %v1023
  %v1062 = vpack.c.bf16 %v1026, %v1025
  %v1063 = vpack.c.bf16 %v1028, %v1027
  %v1064 = vpack.c.bf16 %v1030, %v1029
  %v1065 = vpack.c.bf16 %v1032, %v1031
  %v1066 = vpack.c.bf16 %v1034, %v1033
  %v1067 = vld [vmem:[%s2 + $0x50] sm:$0xf]
  %v1068 = vld [vmem:[%s2 + $0x54] sm:$0xf]
  %v1069 = vld [vmem:[%s2 + $0x58] sm:$0xf]
  %v1070 = vld [vmem:[%s2 + $0x5c] sm:$0xf]
  %v1071 = vld [vmem:[%s2 + $0x60] sm:$0xf]
  %v1072 = vld [vmem:[%s2 + $0x64] sm:$0xf]
  %v1073 = vld [vmem:[%s2 + $0x68] sm:$0xf]
  %v1074 = vld [vmem:[%s2 + $0x6c] sm:$0xf]
  %v1075 = vld [vmem:[%s2 + $0x70] sm:$0xf]
  %v1076 = vld [vmem:[%s2 + $0x74] sm:$0xf]
  %v1077 = vld [vmem:[%s2 + $0x78] sm:$0xf]
  %v1078 = vld [vmem:[%s2 + $0x7c] sm:$0xf]
  %v1079 = vld [vmem:[%s2 + $0x80] sm:$0xf]
  %v1080 = vld [vmem:[%s2 + $0x84] sm:$0xf]
  %v1081 = vld [vmem:[%s2 + $0x88] sm:$0xf]
  %v1082 = vld [vmem:[%s2 + $0x8c] sm:$0xf]
  %v1083 = vld [vmem:[%s3 + $0x105] ss:$0 sm:$0xff]
  %v1100 = vunpack.c.l.b16 %v1067
  %v1101 = vunpack.c.l.b16 %v1068
  %v1102 = vunpack.c.l.b16 %v1069
  %v1103 = vunpack.c.l.b16 %v1070
  %v1104 = vunpack.c.l.b16 %v1071
  %v1105 = vunpack.c.l.b16 %v1072
  %v1106 = vunpack.c.l.b16 %v1073
  %v1107 = vunpack.c.l.b16 %v1074
  %v1108 = vunpack.c.l.b16 %v1075
  %v1109 = vunpack.c.l.b16 %v1076
  %v1110 = vunpack.c.l.b16 %v1077
  %v1111 = vunpack.c.l.b16 %v1078
  %v1112 = vunpack.c.l.b16 %v1079
  %v1113 = vunpack.c.l.b16 %v1080
  %v1114 = vunpack.c.l.b16 %v1081
  %v1115 = vunpack.c.l.b16 %v1082
  %v1116 = vpack.c.b16 %v1101, %v1100
  %v1117 = vpack.c.b16 %v1103, %v1102
  %v1118 = vpack.c.b16 %v1105, %v1104
  %v1119 = vpack.c.b16 %v1107, %v1106
  %v1120 = vpack.c.b16 %v1109, %v1108
  %v1121 = vpack.c.b16 %v1111, %v1110
  %v1122 = vpack.c.b16 %v1113, %v1112
  %v1123 = vpack.c.b16 %v1115, %v1114
  %1132 = vmatprep.subr.bf16.mxu0 0
  %1133 = vmatpush1.bf16.msra.mxu0 %v1123
  %1134 = vmatprep.subr.bf16.mxu0 0
  %1135 = vmatpush1.bf16.msra.mxu0 %v1122
  %1136 = vmatprep.subr.bf16.mxu0 0
  %1137 = vmatpush1.bf16.msra.mxu0 %v1121
  %1138 = vmatprep.subr.bf16.mxu0 0
  %1139 = vmatpush1.bf16.msra.mxu0 %v1120
  %1140 = vmatprep.subr.bf16.mxu0 0
  %1141 = vmatpush1.bf16.msra.mxu0 %v1119
  %1142 = vmatprep.subr.bf16.mxu0 0
  %1143 = vmatpush1.bf16.msra.mxu0 %v1118
  %1144 = vmatprep.subr.bf16.mxu0 0
  %1145 = vmatpush1.bf16.msra.mxu0 %v1117
  %1146 = vmatprep.subr.bf16.mxu0 0
  %1147 = vmatpush1.bf16.msra.mxu0 %v1116
  %1148 = vmatprep.subr.bf16.mxu0 0
  %1149 = vmatpush2.bf16.msra.mxu0 0
  %1150 = vmatprep.subr.bf16.mxu0 0
  %1151 = vmatpush2.bf16.msra.mxu0 0
  %1152 = vmatprep.subr.bf16.mxu0 0
  %1153 = vmatpush2.bf16.msra.mxu0 0
  %1154 = vmatprep.subr.bf16.mxu0 0
  %1155 = vmatpush2.bf16.msra.mxu0 0
  %1156 = vmatprep.subr.bf16.mxu0 0
  %1157 = vmatpush2.bf16.msra.mxu0 0
  %1158 = vmatprep.subr.bf16.mxu0 0
  %1159 = vmatpush2.bf16.msra.mxu0 0
  %1160 = vmatprep.subr.bf16.mxu0 0
  %1161 = vmatpush2.bf16.msra.mxu0 0
  %1162 = vmatprep.subr.bf16.mxu0 0
  %1163 = vmatpush2.bf16.msra.mxu0 0
  %1164 = vmatprep.mubr.bf16.mxu0 0
  %1165 = vmatmul.mubr.bf16.gmra.mxu0 %v1035
  %v1166 = vpop.f32.mrf.mxu0
  %v1167 = vadd.f32 %v1083, %v1166
  %v1168 = vpop.f32.mrf.mxu0
  %v1169 = vpop.f32.mrf.mxu0
  %v1170 = vadd.f32 %v1083, %v1169
  %v1171 = vpop.f32.mrf.mxu0
  %1172 = vmatprep.mubr.bf16.mxu0 0
  %1173 = vmatmul.mubr.bf16.gmra.mxu0 %v1036
  %v1174 = vpop.f32.mrf.mxu0
  %v1175 = vadd.f32 %v1083, %v1174
  %v1176 = vpop.f32.mrf.mxu0
  %v1177 = vpop.f32.mrf.mxu0
  %v1178 = vadd.f32 %v1083, %v1177
  %v1179 = vpop.f32.mrf.mxu0
  %1180 = vmatprep.mubr.bf16.mxu0 0
  %1181 = vmatmul.mubr.bf16.gmra.mxu0 %v1037
  %v1182 = vpop.f32.mrf.mxu0
  %v1183 = vadd.f32 %v1083, %v1182
  %v1184 = vpop.f32.mrf.mxu0
  %v1185 = vpop.f32.mrf.mxu0
  %v1186 = vadd.f32 %v1083, %v1185
  %v1187 = vpop.f32.mrf.mxu0
  %1188 = vmatprep.mubr.bf16.mxu0 0
  %1189 = vmatmul.mubr.bf16.gmra.mxu0 %v1038
  %v1190 = vpop.f32.mrf.mxu0
  %v1191 = vadd.f32 %v1083, %v1190
  %v1192 = vpop.f32.mrf.mxu0
  %v1193 = vpop.f32.mrf.mxu0
  %v1194 = vadd.f32 %v1083, %v1193
  %v1195 = vpop.f32.mrf.mxu0
  %1196 = vmatprep.mubr.bf16.mxu0 0
  %1197 = vmatmul.mubr.bf16.gmra.mxu0 %v1039
  %v1198 = vpop.f32.mrf.mxu0
  %v1199 = vadd.f32 %v1083, %v1198
  %v1200 = vpop.f32.mrf.mxu0
  %v1201 = vpop.f32.mrf.mxu0
  %v1202 = vadd.f32 %v1083, %v1201
  %v1203 = vpop.f32.mrf.mxu0
  %1204 = vmatprep.mubr.bf16.mxu0 0
  %1205 = vmatmul.mubr.bf16.gmra.mxu0 %v1040
  %v1206 = vpop.f32.mrf.mxu0
  %v1207 = vadd.f32 %v1083, %v1206
  %v1208 = vpop.f32.mrf.mxu0
  %v1209 = vpop.f32.mrf.mxu0
  %v1210 = vadd.f32 %v1083, %v1209
  %v1211 = vpop.f32.mrf.mxu0
  %1212 = vmatprep.mubr.bf16.mxu0 0
  %1213 = vmatmul.mubr.bf16.gmra.mxu0 %v1041
  %v1214 = vpop.f32.mrf.mxu0
  %v1215 = vadd.f32 %v1083, %v1214
  %v1216 = vpop.f32.mrf.mxu0
  %v1217 = vpop.f32.mrf.mxu0
  %v1218 = vadd.f32 %v1083, %v1217
  %v1219 = vpop.f32.mrf.mxu0
  %1220 = vmatprep.mubr.bf16.mxu0 0
  %1221 = vmatmul.mubr.bf16.gmra.mxu0 %v1042
  %v1222 = vpop.f32.mrf.mxu0
  %v1223 = vadd.f32 %v1083, %v1222
  %v1224 = vpop.f32.mrf.mxu0
  %v1225 = vpop.f32.mrf.mxu0
  %v1226 = vadd.f32 %v1083, %v1225
  %v1227 = vpop.f32.mrf.mxu0
  %1228 = vmatprep.mubr.bf16.mxu0 0
  %1229 = vmatmul.mubr.bf16.gmra.mxu0 %v1043
  %v1230 = vpop.f32.mrf.mxu0
  %v1231 = vadd.f32 %v1083, %v1230
  %v1232 = vpop.f32.mrf.mxu0
  %v1233 = vpop.f32.mrf.mxu0
  %v1234 = vadd.f32 %v1083, %v1233
  %v1235 = vpop.f32.mrf.mxu0
  %1236 = vmatprep.mubr.bf16.mxu0 0
  %1237 = vmatmul.mubr.bf16.gmra.mxu0 %v1044
  %v1238 = vpop.f32.mrf.mxu0
  %v1239 = vadd.f32 %v1083, %v1238
  %v1240 = vpop.f32.mrf.mxu0
  %v1241 = vpop.f32.mrf.mxu0
  %v1242 = vadd.f32 %v1083, %v1241
  %v1243 = vpop.f32.mrf.mxu0
  %1244 = vmatprep.mubr.bf16.mxu0 0
  %1245 = vmatmul.mubr.bf16.gmra.mxu0 %v1045
  %v1246 = vpop.f32.mrf.mxu0
  %v1247 = vadd.f32 %v1083, %v1246
  %v1248 = vpop.f32.mrf.mxu0
  %v1249 = vpop.f32.mrf.mxu0
  %v1250 = vadd.f32 %v1083, %v1249
  %v1251 = vpop.f32.mrf.mxu0
  %1252 = vmatprep.mubr.bf16.mxu0 0
  %1253 = vmatmul.mubr.bf16.gmra.mxu0 %v1046
  %v1254 = vpop.f32.mrf.mxu0
  %v1255 = vadd.f32 %v1083, %v1254
  %v1256 = vpop.f32.mrf.mxu0
  %v1257 = vpop.f32.mrf.mxu0
  %v1258 = vadd.f32 %v1083, %v1257
  %v1259 = vpop.f32.mrf.mxu0
  %1260 = vmatprep.mubr.bf16.mxu0 0
  %1261 = vmatmul.mubr.bf16.gmra.mxu0 %v1047
  %v1262 = vpop.f32.mrf.mxu0
  %v1263 = vadd.f32 %v1083, %v1262
  %v1264 = vpop.f32.mrf.mxu0
  %v1265 = vpop.f32.mrf.mxu0
  %v1266 = vadd.f32 %v1083, %v1265
  %v1267 = vpop.f32.mrf.mxu0
  %1268 = vmatprep.mubr.bf16.mxu0 0
  %1269 = vmatmul.mubr.bf16.gmra.mxu0 %v1048
  %v1270 = vpop.f32.mrf.mxu0
  %v1271 = vadd.f32 %v1083, %v1270
  %v1272 = vpop.f32.mrf.mxu0
  %v1273 = vpop.f32.mrf.mxu0
  %v1274 = vadd.f32 %v1083, %v1273
  %v1275 = vpop.f32.mrf.mxu0
  %1276 = vmatprep.mubr.bf16.mxu0 0
  %1277 = vmatmul.mubr.bf16.gmra.mxu0 %v1049
  %v1278 = vpop.f32.mrf.mxu0
  %v1279 = vadd.f32 %v1083, %v1278
  %v1280 = vpop.f32.mrf.mxu0
  %v1281 = vpop.f32.mrf.mxu0
  %v1282 = vadd.f32 %v1083, %v1281
  %v1283 = vpop.f32.mrf.mxu0
  %1284 = vmatprep.mubr.bf16.mxu0 0
  %1285 = vmatmul.mubr.bf16.gmra.mxu0 %v1050
  %v1286 = vpop.f32.mrf.mxu0
  %v1287 = vadd.f32 %v1083, %v1286
  %v1288 = vpop.f32.mrf.mxu0
  %v1289 = vpop.f32.mrf.mxu0
  %v1290 = vadd.f32 %v1083, %v1289
  %v1291 = vpop.f32.mrf.mxu0
  %1292 = vmatprep.mubr.bf16.mxu0 0
  %1293 = vmatmul.mubr.bf16.gmra.mxu0 %v1051
  %v1294 = vpop.f32.mrf.mxu0
  %v1295 = vadd.f32 %v1083, %v1294
  %v1296 = vpop.f32.mrf.mxu0
  %v1297 = vpop.f32.mrf.mxu0
  %v1298 = vadd.f32 %v1083, %v1297
  %v1299 = vpop.f32.mrf.mxu0
  %1300 = vmatprep.mubr.bf16.mxu0 0
  %1301 = vmatmul.mubr.bf16.gmra.mxu0 %v1052
  %v1302 = vpop.f32.mrf.mxu0
  %v1303 = vadd.f32 %v1083, %v1302
  %v1304 = vpop.f32.mrf.mxu0
  %v1305 = vpop.f32.mrf.mxu0
  %v1306 = vadd.f32 %v1083, %v1305
  %v1307 = vpop.f32.mrf.mxu0
  %1308 = vmatprep.mubr.bf16.mxu0 0
  %1309 = vmatmul.mubr.bf16.gmra.mxu0 %v1053
  %v1310 = vpop.f32.mrf.mxu0
  %v1311 = vadd.f32 %v1083, %v1310
  %v1312 = vpop.f32.mrf.mxu0
  %v1313 = vpop.f32.mrf.mxu0
  %v1314 = vadd.f32 %v1083, %v1313
  %v1315 = vpop.f32.mrf.mxu0
  %1316 = vmatprep.mubr.bf16.mxu0 0
  %1317 = vmatmul.mubr.bf16.gmra.mxu0 %v1054
  %v1318 = vpop.f32.mrf.mxu0
  %v1319 = vadd.f32 %v1083, %v1318
  %v1320 = vpop.f32.mrf.mxu0
  %v1321 = vpop.f32.mrf.mxu0
  %v1322 = vadd.f32 %v1083, %v1321
  %v1323 = vpop.f32.mrf.mxu0
  %1324 = vmatprep.mubr.bf16.mxu0 0
  %1325 = vmatmul.mubr.bf16.gmra.mxu0 %v1055
  %v1326 = vpop.f32.mrf.mxu0
  %v1327 = vadd.f32 %v1083, %v1326
  %v1328 = vpop.f32.mrf.mxu0
  %v1329 = vpop.f32.mrf.mxu0
  %v1330 = vadd.f32 %v1083, %v1329
  %v1331 = vpop.f32.mrf.mxu0
  %1332 = vmatprep.mubr.bf16.mxu0 0
  %1333 = vmatmul.mubr.bf16.gmra.mxu0 %v1056
  %v1334 = vpop.f32.mrf.mxu0
  %v1335 = vadd.f32 %v1083, %v1334
  %v1336 = vpop.f32.mrf.mxu0
  %v1337 = vpop.f32.mrf.mxu0
  %v1338 = vadd.f32 %v1083, %v1337
  %v1339 = vpop.f32.mrf.mxu0
  %1340 = vmatprep.mubr.bf16.mxu0 0
  %1341 = vmatmul.mubr.bf16.gmra.mxu0 %v1057
  %v1342 = vpop.f32.mrf.mxu0
  %v1343 = vadd.f32 %v1083, %v1342
  %v1344 = vpop.f32.mrf.mxu0
  %v1345 = vpop.f32.mrf.mxu0
  %v1346 = vadd.f32 %v1083, %v1345
  %v1347 = vpop.f32.mrf.mxu0
  %1348 = vmatprep.mubr.bf16.mxu0 0
  %1349 = vmatmul.mubr.bf16.gmra.mxu0 %v1058
  %v1350 = vpop.f32.mrf.mxu0
  %v1351 = vadd.f32 %v1083, %v1350
  %v1352 = vpop.f32.mrf.mxu0
  %v1353 = vpop.f32.mrf.mxu0
  %v1354 = vadd.f32 %v1083, %v1353
  %v1355 = vpop.f32.mrf.mxu0
  %1356 = vmatprep.mubr.bf16.mxu0 0
  %1357 = vmatmul.mubr.bf16.gmra.mxu0 %v1059
  %v1358 = vpop.f32.mrf.mxu0
  %v1359 = vadd.f32 %v1083, %v1358
  %v1360 = vpop.f32.mrf.mxu0
  %v1361 = vpop.f32.mrf.mxu0
  %v1362 = vadd.f32 %v1083, %v1361
  %v1363 = vpop.f32.mrf.mxu0
  %1364 = vmatprep.mubr.bf16.mxu0 0
  %1365 = vmatmul.mubr.bf16.gmra.mxu0 %v1060
  %v1366 = vpop.f32.mrf.mxu0
  %v1367 = vadd.f32 %v1083, %v1366
  %v1368 = vpop.f32.mrf.mxu0
  %v1369 = vpop.f32.mrf.mxu0
  %v1370 = vadd.f32 %v1083, %v1369
  %v1371 = vpop.f32.mrf.mxu0
  %1372 = vmatprep.mubr.bf16.mxu0 0
  %1373 = vmatmul.mubr.bf16.gmra.mxu0 %v1061
  %v1374 = vpop.f32.mrf.mxu0
  %v1375 = vadd.f32 %v1083, %v1374
  %v1376 = vpop.f32.mrf.mxu0
  %v1377 = vpop.f32.mrf.mxu0
  %v1378 = vadd.f32 %v1083, %v1377
  %v1379 = vpop.f32.mrf.mxu0
  %1380 = vmatprep.mubr.bf16.mxu0 0
  %1381 = vmatmul.mubr.bf16.gmra.mxu0 %v1062
  %v1382 = vpop.f32.mrf.mxu0
  %v1383 = vadd.f32 %v1083, %v1382
  %v1384 = vpop.f32.mrf.mxu0
  %v1385 = vpop.f32.mrf.mxu0
  %v1386 = vadd.f32 %v1083, %v1385
  %v1387 = vpop.f32.mrf.mxu0
  %1388 = vmatprep.mubr.bf16.mxu0 0
  %1389 = vmatmul.mubr.bf16.gmra.mxu0 %v1063
  %v1390 = vpop.f32.mrf.mxu0
  %v1391 = vadd.f32 %v1083, %v1390
  %v1392 = vpop.f32.mrf.mxu0
  %v1393 = vpop.f32.mrf.mxu0
  %v1394 = vadd.f32 %v1083, %v1393
  %v1395 = vpop.f32.mrf.mxu0
  %1396 = vmatprep.mubr.bf16.mxu0 0
  %1397 = vmatmul.mubr.bf16.gmra.mxu0 %v1064
  %v1398 = vpop.f32.mrf.mxu0
  %v1399 = vadd.f32 %v1083, %v1398
  %v1400 = vpop.f32.mrf.mxu0
  %v1401 = vpop.f32.mrf.mxu0
  %v1402 = vadd.f32 %v1083, %v1401
  %v1403 = vpop.f32.mrf.mxu0
  %1404 = vmatprep.mubr.bf16.mxu0 0
  %1405 = vmatmul.mubr.bf16.gmra.mxu0 %v1065
  %v1406 = vpop.f32.mrf.mxu0
  %v1407 = vadd.f32 %v1083, %v1406
  %v1408 = vpop.f32.mrf.mxu0
  %v1409 = vpop.f32.mrf.mxu0
  %v1410 = vadd.f32 %v1083, %v1409
  %v1411 = vpop.f32.mrf.mxu0
  %1412 = vmatprep.mubr.bf16.mxu0 0
  %1413 = vmatmul.mubr.bf16.gmra.mxu0 %v1066
  %v1414 = vpop.f32.mrf.mxu0
  %v1415 = vadd.f32 %v1083, %v1414
  %v1416 = vpop.f32.mrf.mxu0
  %v1417 = vpop.f32.mrf.mxu0
  %v1418 = vadd.f32 %v1083, %v1417
  %v1419 = vpop.f32.mrf.mxu0
  %1420 = vdwg.mxu0
  %v1421 = vmax.f32 %v1167, 0.0
  %v1422 = vmax.f32 %v1170, 0.0
  %v1423 = vmax.f32 %v1175, 0.0
  %v1424 = vmax.f32 %v1178, 0.0
  %v1425 = vmax.f32 %v1183, 0.0
  %v1426 = vmax.f32 %v1186, 0.0
  %v1427 = vmax.f32 %v1191, 0.0
  %v1428 = vmax.f32 %v1194, 0.0
  %v1429 = vmax.f32 %v1199, 0.0
  %v1430 = vmax.f32 %v1202, 0.0
  %v1431 = vmax.f32 %v1207, 0.0
  %v1432 = vmax.f32 %v1210, 0.0
  %v1433 = vmax.f32 %v1215, 0.0
  %v1434 = vmax.f32 %v1218, 0.0
  %v1435 = vmax.f32 %v1223, 0.0
  %v1436 = vmax.f32 %v1226, 0.0
  %v1437 = vmax.f32 %v1231, 0.0
  %v1438 = vmax.f32 %v1234, 0.0
  %v1439 = vmax.f32 %v1239, 0.0
  %v1440 = vmax.f32 %v1242, 0.0
  %v1441 = vmax.f32 %v1247, 0.0
  %v1442 = vmax.f32 %v1250, 0.0
  %v1443 = vmax.f32 %v1255, 0.0
  %v1444 = vmax.f32 %v1258, 0.0
  %v1445 = vmax.f32 %v1263, 0.0
  %v1446 = vmax.f32 %v1266, 0.0
  %v1447 = vmax.f32 %v1271, 0.0
  %v1448 = vmax.f32 %v1274, 0.0
  %v1449 = vmax.f32 %v1279, 0.0
  %v1450 = vmax.f32 %v1282, 0.0
  %v1451 = vmax.f32 %v1287, 0.0
  %v1452 = vmax.f32 %v1290, 0.0
  %v1453 = vmax.f32 %v1295, 0.0
  %v1454 = vmax.f32 %v1298, 0.0
  %v1455 = vmax.f32 %v1303, 0.0
  %v1456 = vmax.f32 %v1306, 0.0
  %v1457 = vmax.f32 %v1311, 0.0
  %v1458 = vmax.f32 %v1314, 0.0
  %v1459 = vmax.f32 %v1319, 0.0
  %v1460 = vmax.f32 %v1322, 0.0
  %v1461 = vmax.f32 %v1327, 0.0
  %v1462 = vmax.f32 %v1330, 0.0
  %v1463 = vmax.f32 %v1335, 0.0
  %v1464 = vmax.f32 %v1338, 0.0
  %v1465 = vmax.f32 %v1343, 0.0
  %v1466 = vmax.f32 %v1346, 0.0
  %v1467 = vmax.f32 %v1351, 0.0
  %v1468 = vmax.f32 %v1354, 0.0
  %v1469 = vmax.f32 %v1359, 0.0
  %v1470 = vmax.f32 %v1362, 0.0
  %v1471 = vmax.f32 %v1367, 0.0
  %v1472 = vmax.f32 %v1370, 0.0
  %v1473 = vmax.f32 %v1375, 0.0
  %v1474 = vmax.f32 %v1378, 0.0
  %v1475 = vmax.f32 %v1383, 0.0
  %v1476 = vmax.f32 %v1386, 0.0
  %v1477 = vmax.f32 %v1391, 0.0
  %v1478 = vmax.f32 %v1394, 0.0
  %v1479 = vmax.f32 %v1399, 0.0
  %v1480 = vmax.f32 %v1402, 0.0
  %v1481 = vmax.f32 %v1407, 0.0
  %v1482 = vmax.f32 %v1410, 0.0
  %v1483 = vmax.f32 %v1415, 0.0
  %v1484 = vmax.f32 %v1418, 0.0
  %v1485 = vmax.f32 %v1421, %v1422
  %v1486 = vmax.f32 %v1485, %v1423
  %v1487 = vmax.f32 %v1486, %v1424
  %v1488 = vrot.slane %v1487, 4
  %v1489 = vmax.f32 %v1487, %v1488
  %v1490 = vrot.slane %v1489, 2
  %v1491 = vmax.f32 %v1489, %v1490
  %v1492 = vrot.slane %v1491, 1
  %v1493 = vmax.f32 %v1491, %v1492
  %v1494 = vmax.f32 %v1425, %v1426
  %v1495 = vmax.f32 %v1494, %v1427
  %v1496 = vmax.f32 %v1495, %v1428
  %v1497 = vrot.slane %v1496, 4
  %v1498 = vmax.f32 %v1496, %v1497
  %v1499 = vrot.slane %v1498, 2
  %v1500 = vmax.f32 %v1498, %v1499
  %v1501 = vrot.slane %v1500, 1
  %v1502 = vmax.f32 %v1500, %v1501
  %v1503 = vmax.f32 %v1429, %v1430
  %v1504 = vmax.f32 %v1503, %v1431
  %v1505 = vmax.f32 %v1504, %v1432
  %v1506 = vrot.slane %v1505, 4
  %v1507 = vmax.f32 %v1505, %v1506
  %v1508 = vrot.slane %v1507, 2
  %v1509 = vmax.f32 %v1507, %v1508
  %v1510 = vrot.slane %v1509, 1
  %v1511 = vmax.f32 %v1509, %v1510
  %v1512 = vmax.f32 %v1433, %v1434
  %v1513 = vmax.f32 %v1512, %v1435
  %v1514 = vmax.f32 %v1513, %v1436
  %v1515 = vrot.slane %v1514, 4
  %v1516 = vmax.f32 %v1514, %v1515
  %v1517 = vrot.slane %v1516, 2
  %v1518 = vmax.f32 %v1516, %v1517
  %v1519 = vrot.slane %v1518, 1
  %v1520 = vmax.f32 %v1518, %v1519
  %v1521 = vmax.f32 %v1437, %v1438
  %v1522 = vmax.f32 %v1521, %v1439
  %v1523 = vmax.f32 %v1522, %v1440
  %v1524 = vrot.slane %v1523, 4
  %v1525 = vmax.f32 %v1523, %v1524
  %v1526 = vrot.slane %v1525, 2
  %v1527 = vmax.f32 %v1525, %v1526
  %v1528 = vrot.slane %v1527, 1
  %v1529 = vmax.f32 %v1527, %v1528
  %v1530 = vmax.f32 %v1441, %v1442
  %v1531 = vmax.f32 %v1530, %v1443
  %v1532 = vmax.f32 %v1531, %v1444
  %v1533 = vrot.slane %v1532, 4
  %v1534 = vmax.f32 %v1532, %v1533
  %v1535 = vrot.slane %v1534, 2
  %v1536 = vmax.f32 %v1534, %v1535
  %v1537 = vrot.slane %v1536, 1
  %v1538 = vmax.f32 %v1536, %v1537
  %v1539 = vmax.f32 %v1445, %v1446
  %v1540 = vmax.f32 %v1539, %v1447
  %v1541 = vmax.f32 %v1540, %v1448
  %v1542 = vrot.slane %v1541, 4
  %v1543 = vmax.f32 %v1541, %v1542
  %v1544 = vrot.slane %v1543, 2
  %v1545 = vmax.f32 %v1543, %v1544
  %v1546 = vrot.slane %v1545, 1
  %v1547 = vmax.f32 %v1545, %v1546
  %v1548 = vmax.f32 %v1449, %v1450
  %v1549 = vmax.f32 %v1548, %v1451
  %v1550 = vmax.f32 %v1549, %v1452
  %v1551 = vrot.slane %v1550, 4
  %v1552 = vmax.f32 %v1550, %v1551
  %v1553 = vrot.slane %v1552, 2
  %v1554 = vmax.f32 %v1552, %v1553
  %v1555 = vrot.slane %v1554, 1
  %v1556 = vmax.f32 %v1554, %v1555
  %v1557 = vmax.f32 %v1453, %v1454
  %v1558 = vmax.f32 %v1557, %v1455
  %v1559 = vmax.f32 %v1558, %v1456
  %v1560 = vrot.slane %v1559, 4
  %v1561 = vmax.f32 %v1559, %v1560
  %v1562 = vrot.slane %v1561, 2
  %v1563 = vmax.f32 %v1561, %v1562
  %v1564 = vrot.slane %v1563, 1
  %v1565 = vmax.f32 %v1563, %v1564
  %v1566 = vmax.f32 %v1457, %v1458
  %v1567 = vmax.f32 %v1566, %v1459
  %v1568 = vmax.f32 %v1567, %v1460
  %v1569 = vrot.slane %v1568, 4
  %v1570 = vmax.f32 %v1568, %v1569
  %v1571 = vrot.slane %v1570, 2
  %v1572 = vmax.f32 %v1570, %v1571
  %v1573 = vrot.slane %v1572, 1
  %v1574 = vmax.f32 %v1572, %v1573
  %v1575 = vmax.f32 %v1461, %v1462
  %v1576 = vmax.f32 %v1575, %v1463
  %v1577 = vmax.f32 %v1576, %v1464
  %v1578 = vrot.slane %v1577, 4
  %v1579 = vmax.f32 %v1577, %v1578
  %v1580 = vrot.slane %v1579, 2
  %v1581 = vmax.f32 %v1579, %v1580
  %v1582 = vrot.slane %v1581, 1
  %v1583 = vmax.f32 %v1581, %v1582
  %v1584 = vmax.f32 %v1465, %v1466
  %v1585 = vmax.f32 %v1584, %v1467
  %v1586 = vmax.f32 %v1585, %v1468
  %v1587 = vrot.slane %v1586, 4
  %v1588 = vmax.f32 %v1586, %v1587
  %v1589 = vrot.slane %v1588, 2
  %v1590 = vmax.f32 %v1588, %v1589
  %v1591 = vrot.slane %v1590, 1
  %v1592 = vmax.f32 %v1590, %v1591
  %v1593 = vmax.f32 %v1469, %v1470
  %v1594 = vmax.f32 %v1593, %v1471
  %v1595 = vmax.f32 %v1594, %v1472
  %v1596 = vrot.slane %v1595, 4
  %v1597 = vmax.f32 %v1595, %v1596
  %v1598 = vrot.slane %v1597, 2
  %v1599 = vmax.f32 %v1597, %v1598
  %v1600 = vrot.slane %v1599, 1
  %v1601 = vmax.f32 %v1599, %v1600
  %v1602 = vmax.f32 %v1473, %v1474
  %v1603 = vmax.f32 %v1602, %v1475
  %v1604 = vmax.f32 %v1603, %v1476
  %v1605 = vrot.slane %v1604, 4
  %v1606 = vmax.f32 %v1604, %v1605
  %v1607 = vrot.slane %v1606, 2
  %v1608 = vmax.f32 %v1606, %v1607
  %v1609 = vrot.slane %v1608, 1
  %v1610 = vmax.f32 %v1608, %v1609
  %v1611 = vmax.f32 %v1477, %v1478
  %v1612 = vmax.f32 %v1611, %v1479
  %v1613 = vmax.f32 %v1612, %v1480
  %v1614 = vrot.slane %v1613, 4
  %v1615 = vmax.f32 %v1613, %v1614
  %v1616 = vrot.slane %v1615, 2
  %v1617 = vmax.f32 %v1615, %v1616
  %v1618 = vrot.slane %v1617, 1
  %v1619 = vmax.f32 %v1617, %v1618
  %v1620 = vmax.f32 %v1481, %v1482
  %v1621 = vmax.f32 %v1620, %v1483
  %v1622 = vmax.f32 %v1621, %v1484
  %v1623 = vrot.slane %v1622, 4
  %v1624 = vmax.f32 %v1622, %v1623
  %v1625 = vrot.slane %v1624, 2
  %v1626 = vmax.f32 %v1624, %v1625
  %v1627 = vrot.slane %v1626, 1
  %v1628 = vmax.f32 %v1626, %v1627
  %v1629 = vld [vmem:[%s3] sm:$0xff]
  %v1630 = vld [vmem:[%s3 + $0x8] sm:$0xff]
  %v1631 = vld [vmem:[%s3 + $0x10] sm:$0xff]
  %v1632 = vld [vmem:[%s3 + $0x18] sm:$0xff]
  %v1633 = vld [vmem:[%s3 + $0x20] sm:$0xff]
  %v1634 = vld [vmem:[%s3 + $0x28] sm:$0xff]
  %v1635 = vld [vmem:[%s3 + $0x30] sm:$0xff]
  %v1636 = vld [vmem:[%s3 + $0x38] sm:$0xff]
  %v1637 = vld [vmem:[%s3 + $0x40] sm:$0xff]
  %v1638 = vld [vmem:[%s3 + $0x48] sm:$0xff]
  %v1639 = vld [vmem:[%s3 + $0x50] sm:$0xff]
  %v1640 = vld [vmem:[%s3 + $0x58] sm:$0xff]
  %v1641 = vld [vmem:[%s3 + $0x60] sm:$0xff]
  %v1642 = vld [vmem:[%s3 + $0x68] sm:$0xff]
  %v1643 = vld [vmem:[%s3 + $0x70] sm:$0xff]
  %v1644 = vld [vmem:[%s3 + $0x78] sm:$0xff]
  %v1645 = vld [vmem:[%s3 + $0x80] sm:$0xff]
  %v1646 = vld [vmem:[%s3 + $0x88] sm:$0xff]
  %v1647 = vld [vmem:[%s3 + $0x90] sm:$0xff]
  %v1648 = vld [vmem:[%s3 + $0x98] sm:$0xff]
  %v1649 = vld [vmem:[%s3 + $0xa0] sm:$0xff]
  %v1650 = vld [vmem:[%s3 + $0xa8] sm:$0xff]
  %v1651 = vld [vmem:[%s3 + $0xb0] sm:$0xff]
  %v1652 = vld [vmem:[%s3 + $0xb8] sm:$0xff]
  %v1653 = vld [vmem:[%s3 + $0xc0] sm:$0xff]
  %v1654 = vld [vmem:[%s3 + $0xc8] sm:$0xff]
  %v1655 = vld [vmem:[%s3 + $0xd0] sm:$0xff]
  %v1656 = vld [vmem:[%s3 + $0xd8] sm:$0xff]
  %v1657 = vld [vmem:[%s3 + $0xe0] sm:$0xff]
  %v1658 = vld [vmem:[%s3 + $0xe8] sm:$0xff]
  %v1659 = vld [vmem:[%s3 + $0xf0] sm:$0xff]
  %v1660 = vld [vmem:[%s3 + $0xf8] sm:$0xff]
  %v1661 = vld [vmem:[%s1] sm:$0xff]
  %v1662 = vld [vmem:[%s1 + $0x8] sm:$0xff]
  %s1663 = scalar_lea.vmem %s3, 256
  %v1664 = vld [vmem:[%s1663] ss:$8 sm:$0x3]
  %1666 = vset.pattern.permute.xlu0 0
  %1667 = vperm.xlu0 %1666, %v1661
  %v1668 = vpop.permute.xlu0 %1667
  %1671 = vset.pattern.permute.xlu0 0
  %1672 = vperm.xlu0 %1671, %v1662
  %v1673 = vpop.permute.xlu0 %1672
  %v1676 = vlaneseq
  %v1677 = vshrl.u32 %v1676, 7
  %v1678 = vsub.s32 0, %v1677
  %v1679 = vrot.slane %v1664, %v1678
  %v1680 = vlaneseq
  %v1681 = vshrl.u32 %v1680, 7
  %v1682 = vsub.s32 1, %v1681
  %v1683 = vrot.slane %v1664, %v1682
  %v1686 = vmul.f32 %v1668, %v1679
  %v1687 = vmul.f32 %v1668, %v1683
  %v1688 = vmul.f32 %v1673, %v1679
  %v1689 = vmul.f32 %v1673, %v1683
  %vm1706 = vcmask 1041409
  %v1707 = vsel %vm1706, %v1502, %v1493
  %vm1708 = vcmask 1042434
  %v1709 = vsel %vm1708, %v1511, %v1707
  %vm1710 = vcmask 1043459
  %v1711 = vsel %vm1710, %v1520, %v1709
  %vm1712 = vcmask 1044484
  %v1713 = vsel %vm1712, %v1529, %v1711
  %vm1714 = vcmask 1045509
  %v1715 = vsel %vm1714, %v1538, %v1713
  %vm1716 = vcmask 1046534
  %v1717 = vsel %vm1716, %v1547, %v1715
  %vm1718 = vcmask 1047559
  %v1719 = vsel %vm1718, %v1556, %v1717
  %v1720 = vsel %vm1706, %v1574, %v1565
  %v1721 = vsel %vm1708, %v1583, %v1720
  %v1722 = vsel %vm1710, %v1592, %v1721
  %v1723 = vsel %vm1712, %v1601, %v1722
  %v1724 = vsel %vm1714, %v1610, %v1723
  %v1725 = vsel %vm1716, %v1619, %v1724
  %v1726 = vsel %vm1718, %v1628, %v1725
  %1729 = vmatprep.subr.mxu0 %v1660
  %1730 = vmatpush1.msra.mxu0 %v1659
  %1731 = vmatprep.subr.mxu0 %v1658
  %1732 = vmatpush1.msra.mxu0 %v1657
  %1733 = vmatprep.subr.mxu0 %v1656
  %1734 = vmatpush1.msra.mxu0 %v1655
  %1735 = vmatprep.subr.mxu0 %v1654
  %1736 = vmatpush1.msra.mxu0 %v1653
  %1737 = vmatprep.subr.mxu0 %v1652
  %1738 = vmatpush1.msra.mxu0 %v1651
  %1739 = vmatprep.subr.mxu0 %v1650
  %1740 = vmatpush1.msra.mxu0 %v1649
  %1741 = vmatprep.subr.mxu0 %v1648
  %1742 = vmatpush1.msra.mxu0 %v1647
  %1743 = vmatprep.subr.mxu0 %v1646
  %1744 = vmatpush1.msra.mxu0 %v1645
  %1745 = vmatprep.subr.mxu0 %v1644
  %1746 = vmatpush1.msra.mxu0 %v1643
  %1747 = vmatprep.subr.mxu0 %v1642
  %1748 = vmatpush1.msra.mxu0 %v1641
  %1749 = vmatprep.subr.mxu0 %v1640
  %1750 = vmatpush1.msra.mxu0 %v1639
  %1751 = vmatprep.subr.mxu0 %v1638
  %1752 = vmatpush1.msra.mxu0 %v1637
  %1753 = vmatprep.subr.mxu0 %v1636
  %1754 = vmatpush1.msra.mxu0 %v1635
  %1755 = vmatprep.subr.mxu0 %v1634
  %1756 = vmatpush1.msra.mxu0 %v1633
  %1757 = vmatprep.subr.mxu0 %v1632
  %1758 = vmatpush1.msra.mxu0 %v1631
  %1759 = vmatprep.subr.mxu0 %v1630
  %1760 = vmatpush1.msra.mxu0 %v1629
  %1761 = vmatprep.subr.mxu0 0.0
  %1762 = vmatpush2.msra.mxu0 0.0
  %1763 = vmatprep.subr.mxu0 0.0
  %1764 = vmatpush2.msra.mxu0 0.0
  %1765 = vmatprep.subr.mxu0 0.0
  %1766 = vmatpush2.msra.mxu0 0.0
  %1767 = vmatprep.subr.mxu0 0.0
  %1768 = vmatpush2.msra.mxu0 0.0
  %1769 = vmatprep.subr.mxu0 0.0
  %1770 = vmatpush2.msra.mxu0 0.0
  %1771 = vmatprep.subr.mxu0 0.0
  %1772 = vmatpush2.msra.mxu0 0.0
  %1773 = vmatprep.subr.mxu0 0.0
  %1774 = vmatpush2.msra.mxu0 0.0
  %1775 = vmatprep.subr.mxu0 0.0
  %1776 = vmatpush2.msra.mxu0 0.0
  %1777 = vmatprep.subr.mxu0 0.0
  %1778 = vmatpush2.msra.mxu0 0.0
  %1779 = vmatprep.subr.mxu0 0.0
  %1780 = vmatpush2.msra.mxu0 0.0
  %1781 = vmatprep.subr.mxu0 0.0
  %1782 = vmatpush2.msra.mxu0 0.0
  %1783 = vmatprep.subr.mxu0 0.0
  %1784 = vmatpush2.msra.mxu0 0.0
  %1785 = vmatprep.subr.mxu0 0.0
  %1786 = vmatpush2.msra.mxu0 0.0
  %1787 = vmatprep.subr.mxu0 0.0
  %1788 = vmatpush2.msra.mxu0 0.0
  %1789 = vmatprep.subr.mxu0 0.0
  %1790 = vmatpush2.msra.mxu0 0.0
  %1791 = vmatprep.subr.mxu0 0.0
  %1792 = vmatpush2.msra.mxu0 0.0
  %1793 = vmatprep.mubr.f32.mxu0 0.0
  %1794 = vmatmul.mubr.f32.gmra.mxu0 %v1719
  %v1795 = vpop.f32.mrf.mxu0
  %v1796 = vadd.f32 %v1686, %v1795
  %v1797 = vpop.f32.mrf.mxu0
  %v1798 = vadd.f32 %v1687, %v1797
  %1799 = vmatprep.mubr.f32.mxu0 0.0
  %1800 = vmatmul.mubr.f32.gmra.mxu0 %v1726
  %v1801 = vpop.f32.mrf.mxu0
  %v1802 = vadd.f32 %v1688, %v1801
  %v1803 = vpop.f32.mrf.mxu0
  %v1804 = vadd.f32 %v1689, %v1803
  %1805 = vdwg.mxu0
  %s1806 = scalar_lea.vmem %s3, 257
  %v1807 = vld [vmem:[%s1806] ss:$8 sm:$0x3]
  %1808 = vset.pattern.permute.xlu0 1
  %1809 = vperm.xlu0 %1808, %v1661
  %v1810 = vpop.permute.xlu0 %1809
  %1812 = vset.pattern.permute.xlu0 1
  %1813 = vperm.xlu0 %1812, %v1662
  %v1814 = vpop.permute.xlu0 %1813
  %v1817 = vlaneseq
  %v1818 = vshrl.u32 %v1817, 7
  %v1819 = vsub.s32 0, %v1818
  %v1820 = vrot.slane %v1807, %v1819
  %v1821 = vlaneseq
  %v1822 = vshrl.u32 %v1821, 7
  %v1823 = vsub.s32 1, %v1822
  %v1824 = vrot.slane %v1807, %v1823
  %v1827 = vmul.f32 %v1810, %v1820
  %v1828 = vmul.f32 %v1810, %v1824
  %v1829 = vmul.f32 %v1814, %v1820
  %v1830 = vmul.f32 %v1814, %v1824
  %v1831 = vadd.f32 %v1796, %v1827
  %v1832 = vadd.f32 %v1798, %v1828
  %v1833 = vadd.f32 %v1802, %v1829
  %v1834 = vadd.f32 %v1804, %v1830
  %s1835 = scalar_lea.vmem %s3, 258
  %v1836 = vld [vmem:[%s1835] ss:$8 sm:$0x3]
  %1837 = vset.pattern.permute.xlu0 2
  %1838 = vperm.xlu0 %1837, %v1661
  %v1839 = vpop.permute.xlu0 %1838
  %1841 = vset.pattern.permute.xlu0 2
  %1842 = vperm.xlu0 %1841, %v1662
  %v1843 = vpop.permute.xlu0 %1842
  %v1846 = vlaneseq
  %v1847 = vshrl.u32 %v1846, 7
  %v1848 = vsub.s32 0, %v1847
  %v1849 = vrot.slane %v1836, %v1848
  %v1850 = vlaneseq
  %v1851 = vshrl.u32 %v1850, 7
  %v1852 = vsub.s32 1, %v1851
  %v1853 = vrot.slane %v1836, %v1852
  %v1856 = vmul.f32 %v1839, %v1849
  %v1857 = vmul.f32 %v1839, %v1853
  %v1858 = vmul.f32 %v1843, %v1849
  %v1859 = vmul.f32 %v1843, %v1853
  %v1860 = vadd.f32 %v1831, %v1856
  %v1861 = vadd.f32 %v1832, %v1857
  %v1862 = vadd.f32 %v1833, %v1858
  %v1863 = vadd.f32 %v1834, %v1859
  %s1864 = scalar_lea.vmem %s3, 262
  %v1865 = vld [vmem:[%s1864] ss:$8 sm:$0x3]
  %v1867 = vlaneseq
  %v1868 = vshrl.u32 %v1867, 7
  %v1869 = vsub.s32 0, %v1868
  %v1870 = vrot.slane %v1865, %v1869
  %v1871 = vlaneseq
  %v1872 = vshrl.u32 %v1871, 7
  %v1873 = vsub.s32 1, %v1872
  %v1874 = vrot.slane %v1865, %v1873
  %v1877 = vadd.f32 %v1860, %v1870
  %v1878 = vadd.f32 %v1861, %v1874
  %v1879 = vadd.f32 %v1862, %v1870
  %v1880 = vadd.f32 %v1863, %v1874
  %v1881 = vmax.f32 %v1877, 0.0
  %v1882 = vmax.f32 %v1878, 0.0
  %v1883 = vmax.f32 %v1879, 0.0
  %v1884 = vmax.f32 %v1880, 0.0
  %s1885 = scalar_lea.vmem %s3, 263
  %v1886 = vld [vmem:[%s1885] ss:$8 sm:$0x3]
  %v1888 = vlaneseq
  %v1889 = vshrl.u32 %v1888, 7
  %v1890 = vsub.s32 0, %v1889
  %v1891 = vrot.slane %v1886, %v1890
  %v1892 = vlaneseq
  %v1893 = vshrl.u32 %v1892, 7
  %v1894 = vsub.s32 1, %v1893
  %v1895 = vrot.slane %v1886, %v1894
  %v1898 = vmul.f32 %v1881, %v1891
  %v1899 = vmul.f32 %v1882, %v1895
  %v1900 = vmul.f32 %v1883, %v1891
  %v1901 = vmul.f32 %v1884, %v1895
  %v1902 = vadd.f32 %v1898, %v1899
  %1903 = vadd.xlane.f32.xlu0 %v1902
  %v1904 = vpop.xlane.xlu0 %1903
  %v1905 = vadd.f32 %v1900, %v1901
  %1906 = vadd.xlane.f32.xlu0 %v1905
  %v1907 = vpop.xlane.xlu0 %1906
  %s1908 = sld [smem:[#allocation2]]
  %v1909 = vstv %s1908
  %v1910 = vadd.f32 %v1904, %v1909
  %v1911 = vadd.f32 %v1907, %v1909
  %v1912 = vsub.f32 1.0, %v1661
  %v1913 = vsub.f32 1.0, %v1662
  %v1914 = vmul.f32 %v1912, -9999.0
  %v1915 = vmul.f32 %v1913, -9999.0
  %v1916 = vadd.f32 %v1910, %v1914
  %v1917 = vadd.f32 %v1911, %v1915
  %1920 = vrot.lane.b32.xlu0 %v1916, 125
  %v1921 = vpop.permute.xlu0 %1920
  %1922 = vrot.lane.b32.xlu0 %v1917, 125
  %v1923 = vpop.permute.xlu0 %1922
  %vm1926 = vcmask 7168
  %1927 = vst.msk [vmem:[%s5] sm:$0xff] %vm1926, %v1921
  %1928 = vst.msk [vmem:[%s5 + $0x8] sm:$0xff] %vm1926, %v1923
  // Predicated region
  $region22: #{vilbert3d_forward.1} parent=0 // pred_check
    _
  $region23: #{vilbert3d_forward.1} parent=0 // pred_check_branch
    %1930 = sbr.rel (0) target = $region25
  $region24: #{vilbert3d_forward.1} parent=0 // pred_region
    _
  $region25: #{vilbert3d_forward.1} parent=0 // pred_fallthru
    _
  // Predicated region
  $region26: #{vilbert3d_forward.1} parent=0 // pred_check
    _
  $region27: #{vilbert3d_forward.1} parent=0 // pred_check_branch
    %1932 = sbr.rel (0) target = $region29
  $region28: #{vilbert3d_forward.1} parent=0 // pred_region
    _
  $region29: #{vilbert3d_forward.1} parent=0 // pred_fallthru
    _

</llo_original>
